<compile_context>
chip_gen: v7x
topology: tpu7x:2x2x1
jax: 0.10.0
libtpu: 0.0.40
codegen_flags: <defaults>
</compile_context>

<pallas_src>
import math

import jax
import jax.numpy as jnp
from jax.experimental import pallas as pl
from jax.experimental.pallas import tpu as pltpu


# --------------------------------------------------------------------------
# small math helpers (used both inside the kernel and in the jnp reference)
# --------------------------------------------------------------------------

def _gelu_tanh(x):
    # tanh-approx GELU: the transcendental goes to the EUP slot; ~1e-3 max
    # abs delta vs the exact erf GELU used by torch.nn.GELU().
    c = 0.7978845608028654  # sqrt(2/pi)
    return 0.5 * x * (1.0 + jnp.tanh(c * (x + 0.044715 * x * x * x)))


def _layernorm(x, g, b, eps):
    mu = jnp.mean(x, axis=-1, keepdims=True)
    var = jnp.mean((x - mu) * (x - mu), axis=-1, keepdims=True)
    return (x - mu) * jax.lax.rsqrt(var + eps) * g + b


# --------------------------------------------------------------------------
# fully fused forward kernel: embed + depth x (attn + mlp) + final LN + head
# --------------------------------------------------------------------------

def _fused_forward_kernel(*, heads, dh, T, eps):
    D = heads * dh

    def kernel(xp_ref, pw_ref, eadd_ref, lw_ref, qw_ref, kw_ref, vw_ref,
               qkvb_ref, projw_ref, fc1w_ref, fc1b_ref, fc2w_ref,
               fin_ref, hb_ref, o_ref, tok_sc):
        l = pl.program_id(1)

        # ---- patch embed + cls token + pos embed (layer 0 only) -----------
        @pl.when(l == 0)
        def _():
            emb = jnp.dot(xp_ref[0].astype(jnp.bfloat16), pw_ref[...],
                          preferred_element_type=jnp.float32)          # (N, D)
            # Disjoint row-range stores (no sublane concat); eadd packs
            # cls + pos[0] into row 0 and patch_b + pos[1:] into rows 1..T-1.
            tok_sc[0:1, :] = eadd_ref[0:1, :]
            tok_sc[1:, :] = emb + eadd_ref[1:, :]

        x = tok_sc[...]                                                # (T, D)

        # per-layer packed (1, D) vectors
        ln1_g = lw_ref[0, 0:1, :]
        ln1_b = lw_ref[0, 1:2, :]
        gamma1 = lw_ref[0, 2:3, :]
        ln2_g = lw_ref[0, 3:4, :]
        ln2_b = lw_ref[0, 4:5, :]
        gamma2 = lw_ref[0, 5:6, :]
        proj_b = lw_ref[0, 6:7, :]
        fc2_b = lw_ref[0, 7:8, :]

        # ---- attention: LN1 -> per-head QKV / scores / PV ->
        #      accumulated per-head out-projection -> LayerScale -> residual
        xn = _layernorm(x, ln1_g, ln1_b, eps).astype(jnp.bfloat16)
        proj_acc = None
        # TODO(synk): at real ViT-S scale run heads via a grid axis /
        # lax.fori_loop and tile queries flash-style instead of this
        # statically unrolled loop.
        for h in range(heads):
            qb = qkvb_ref[0, 3 * h + 0:3 * h + 1, :]                   # (1, dh)
            kb = qkvb_ref[0, 3 * h + 1:3 * h + 2, :]
            vb = qkvb_ref[0, 3 * h + 2:3 * h + 3, :]
            q = (jnp.dot(xn, qw_ref[0, h], preferred_element_type=jnp.float32)
                 + qb).astype(jnp.bfloat16)                            # (T, dh)
            k = (jnp.dot(xn, kw_ref[0, h], preferred_element_type=jnp.float32)
                 + kb).astype(jnp.bfloat16)
            v = (jnp.dot(xn, vw_ref[0, h], preferred_element_type=jnp.float32)
                 + vb).astype(jnp.bfloat16)
            s = jax.lax.dot_general(q, k, (((1,), (1,)), ((), ())),
                                    preferred_element_type=jnp.float32)  # (T, T)
            m = jnp.max(s, axis=-1, keepdims=True)
            p = jnp.exp(s - m)
            p = p * pl.reciprocal(jnp.sum(p, axis=-1, keepdims=True),
                                  approx=True)
            o_h = jnp.dot(p.astype(jnp.bfloat16), v,
                          preferred_element_type=jnp.float32)           # (T, dh)
            contrib = jnp.dot(o_h.astype(jnp.bfloat16), projw_ref[0, h],
                              preferred_element_type=jnp.float32)       # (T, D)
            proj_acc = contrib if proj_acc is None else proj_acc + contrib
        x = x + gamma1 * (proj_acc + proj_b)

        # ---- MLP: LN2 -> FC1 -> tanh-GELU -> FC2 -> LayerScale -> residual
        xn2 = _layernorm(x, ln2_g, ln2_b, eps).astype(jnp.bfloat16)
        h1 = jnp.dot(xn2, fc1w_ref[0],
                     preferred_element_type=jnp.float32) + fc1b_ref[0]
        h1 = _gelu_tanh(h1)
        h2 = jnp.dot(h1.astype(jnp.bfloat16), fc2w_ref[0],
                     preferred_element_type=jnp.float32) + fc2_b
        x = x + gamma2 * h2
        tok_sc[...] = x

        # ---- final LN + Linear(D,1) head + stable log-sigmoid reduction ---
        @pl.when(l == pl.num_programs(1) - 1)
        def _():
            xf = _layernorm(x, fin_ref[0:1, :], fin_ref[1:2, :], eps)
            # Linear(D, 1) as a VPU multiply + lane (XLU) reduction rather
            # than an MXU matvec with a width-1 output.
            logits = jnp.sum(xf * fin_ref[2:3, :], axis=-1,
                             keepdims=True) + hb_ref[...]               # (T, 1)
            log_sig = (jnp.minimum(logits, 0.0)
                       - jnp.log1p(jnp.exp(-jnp.abs(logits))))
            row = jax.lax.broadcasted_iota(jnp.int32, (T, 1), 0)
            patch_mask = (row >= 1).astype(jnp.float32)   # drop the cls token
            neg_logit = jnp.sum(log_sig * patch_mask, axis=0, keepdims=True)
            o_ref[0] = 1.0 - jnp.exp(neg_logit)

    return kernel


# --------------------------------------------------------------------------
# wrapper: trace-time weight packing + single pallas_call
# --------------------------------------------------------------------------

def dino_finegrained_classifier(x, params, *, heads=2, patch=14, eps=1e-6):
    """pos_prob [B,1] = 1 - exp(sum_patches log(sigmoid(head(x_norm_patchtokens))))."""
    B, C, H, W = x.shape
    ph, pw_ = H // patch, W // patch
    N = ph * pw_
    K = C * patch * patch
    D = params["patch_w"].shape[1]
    T = N + 1
    depth = len(params["blocks"])
    dh = D // heads
    Dh = params["blocks"][0]["fc1_w"].shape[1]
    scale = 1.0 / math.sqrt(dh)

    # conv(kernel=stride=14) patch embed rewritten as a matmul over flattened
    # non-overlapping patches.
    xp = x.reshape(B, C, ph, patch, pw_, patch)
    xp = xp.transpose(0, 2, 4, 1, 3, 5).reshape(B, N, K)

    # ---- trace-time weight packing (runs once in XLA, outside the kernel) --
    pos = params["pos_embed"].reshape(T, D)
    embed_add = jnp.concatenate(
        [params["cls_token"].reshape(1, D) + pos[0:1, :],
         params["patch_b"].reshape(1, D) + pos[1:, :]], axis=0)        # (T, D)

    def head_major(w):                        # (D, D) -> (heads, D, dh)
        return w.reshape(D, heads, dh).transpose(1, 0, 2)

    qw, kw, vw, qkvb, projw, lw, fc1w, fc1b, fc2w = ([] for _ in range(9))
    for blk in params["blocks"]:
        wq = blk["qkv_w"][:, :D]
        wk = blk["qkv_w"][:, D:2 * D]
        wv = blk["qkv_w"][:, 2 * D:]
        bq = blk["qkv_b"][:D]
        bk = blk["qkv_b"][D:2 * D]
        bv = blk["qkv_b"][2 * D:]
        qw.append(head_major(wq) * scale)            # fold 1/sqrt(dh) into q
        kw.append(head_major(wk))
        vw.append(head_major(wv))
        qkvb.append(jnp.stack([bq.reshape(heads, dh) * scale,
                               bk.reshape(heads, dh),
                               bv.reshape(heads, dh)],
                              axis=1).reshape(3 * heads, dh))
        projw.append(blk["proj_w"].reshape(heads, dh, D))
        lw.append(jnp.stack([blk["ln1_g"], blk["ln1_b"], blk["gamma1"],
                             blk["ln2_g"], blk["ln2_b"], blk["gamma2"],
                             blk["proj_b"], blk["fc2_b"]], axis=0))     # (8, D)
        fc1w.append(blk["fc1_w"])
        fc1b.append(blk["fc1_b"].reshape(1, Dh))
        fc2w.append(blk["fc2_w"])

    bf16 = jnp.bfloat16
    qw_s = jnp.stack(qw).astype(bf16)                # (depth, heads, D, dh)
    kw_s = jnp.stack(kw).astype(bf16)
    vw_s = jnp.stack(vw).astype(bf16)
    qkvb_s = jnp.stack(qkvb)                         # (depth, 3*heads, dh) f32
    projw_s = jnp.stack(projw).astype(bf16)          # (depth, heads, dh, D)
    lw_s = jnp.stack(lw)                             # (depth, 8, D) f32
    fc1w_s = jnp.stack(fc1w).astype(bf16)            # (depth, D, Dh)
    fc1b_s = jnp.stack(fc1b)                         # (depth, 1, Dh) f32
    fc2w_s = jnp.stack(fc2w).astype(bf16)            # (depth, Dh, D)
    patch_w = params["patch_w"].astype(bf16)         # (K, D)
    fin_vecs = jnp.stack([params["ln_g"], params["ln_b"],
                          params["head_w"]], axis=0)                   # (3, D)
    head_b = params["head_b"].reshape(1, 1)

    # ---- BlockSpecs --------------------------------------------------------
    # TODO(synk): grid-invariant operands (fixed) could use
    # pipeline_mode=pl.Buffered(1) to halve their VMEM footprint at real
    # ViT-S scale; left at default buffering at this toy size.
    def fixed(shape):
        nd = len(shape)

        def imap(b, l):
            return (0,) * nd
        return pl.BlockSpec(shape, imap)

    def per_layer(shape):
        nd = len(shape)

        def imap(b, l):
            return (l,) + (0,) * nd
        return pl.BlockSpec((1,) + shape, imap)

    args = (xp, patch_w, embed_add, lw_s, qw_s, kw_s, vw_s, qkvb_s, projw_s,
            fc1w_s, fc1b_s, fc2w_s, fin_vecs, head_b)
    in_specs = [
        pl.BlockSpec((1, N, K), lambda b, l: (b, 0, 0)),   # patches (per batch)
        fixed((K, D)), fixed((T, D)),                      # patch_w, embed_add
        per_layer((8, D)),                                 # packed LN/scale/bias vecs
        per_layer((heads, D, dh)),                         # q weights (head-major)
        per_layer((heads, D, dh)),                         # k weights
        per_layer((heads, D, dh)),                         # v weights
        per_layer((3 * heads, dh)),                        # qkv biases
        per_layer((heads, dh, D)),                         # out-proj (per-head rows)
        per_layer((D, Dh)), per_layer((1, Dh)),            # fc1 w / b
        per_layer((Dh, D)),                                # fc2 w
        fixed((3, D)), fixed((1, 1)),                      # final LN + head w, head b
    ]

    flops = B * (2 * N * K * D
                 + depth * (8 * T * D * D + 4 * T * T * D + 4 * T * D * Dh)
                 + 2 * T * D)
    transcendentals = B * (depth * (heads * T * T + T * Dh) + 3 * T)
    bytes_accessed = sum(int(a.size) * a.dtype.itemsize for a in args) + B * 4

    out = pl.pallas_call(
        _fused_forward_kernel(heads=heads, dh=dh, T=T, eps=eps),
        out_shape=jax.ShapeDtypeStruct((B, 1, 1), jnp.float32),
        grid=(B, depth),
        in_specs=in_specs,
        out_specs=pl.BlockSpec((1, 1, 1), lambda b, l: (b, 0, 0)),
        scratch_shapes=[pltpu.VMEM((T, D), jnp.float32)],
        compiler_params=pltpu.CompilerParams(
            dimension_semantics=("parallel", "arbitrary")),
        cost_estimate=pl.CostEstimate(flops=int(flops),
                                      transcendentals=int(transcendentals),
                                      bytes_accessed=int(bytes_accessed)),
    )(*args)
    return out.reshape(B, 1)


# --------------------------------------------------------------------------
# Synthetic (scaled-down) DINOv2 backbone parameters + pure-JAX reference
# --------------------------------------------------------------------------

def init_params(key, *, C=3, patch=14, D=32, depth=2, mlp_ratio=4,
                num_patches=4):
    T = num_patches + 1
    keys = jax.random.split(key, 4 + depth)

    def nrm(k, shape, scl=0.02):
        return scl * jax.random.normal(k, shape, dtype=jnp.float32)

    p = {
        "patch_w": nrm(keys[0], (C * patch * patch, D)),
        "patch_b": jnp.zeros((D,), jnp.float32),
        "cls_token": nrm(keys[1], (1, 1, D)),
        "pos_embed": nrm(keys[2], (1, T, D)),
        "ln_g": jnp.ones((D,), jnp.float32),
        "ln_b": jnp.zeros((D,), jnp.float32),
        "head_w": nrm(keys[3], (D,)),
        "head_b": jnp.full((1,), 0.05, jnp.float32),
    }
    blocks = []
    for l in range(depth):
        k0, k1, k2, k3, k4 = jax.random.split(keys[4 + l], 5)
        blocks.append(dict(
            ln1_g=jnp.ones((D,), jnp.float32), ln1_b=jnp.zeros((D,), jnp.float32),
            qkv_w=nrm(k0, (D, 3 * D)), qkv_b=nrm(k4, (3 * D,)),
            proj_w=nrm(k1, (D, D)), proj_b=jnp.zeros((D,), jnp.float32),
            gamma1=jnp.full((D,), 1e-5, jnp.float32),
            ln2_g=jnp.ones((D,), jnp.float32), ln2_b=jnp.zeros((D,), jnp.float32),
            fc1_w=nrm(k2, (D, mlp_ratio * D)),
            fc1_b=jnp.zeros((mlp_ratio * D,), jnp.float32),
            fc2_w=nrm(k3, (mlp_ratio * D, D)),
            fc2_b=jnp.zeros((D,), jnp.float32),
            gamma2=jnp.full((D,), 1e-5, jnp.float32),
        ))
    p["blocks"] = blocks
    return p


def dino_reference(x, params, *, heads=2, patch=14, eps=1e-6):
    """Pure-JAX f32 reference of the same synthetic backbone + head."""
    B, C, H, W = x.shape
    ph, pw_ = H // patch, W // patch
    N = ph * pw_
    D = params["patch_w"].shape[1]
    T = N + 1
    dh = D // heads
    scale = 1.0 / math.sqrt(dh)

    xp = x.reshape(B, C, ph, patch, pw_, patch)
    xp = xp.transpose(0, 2, 4, 1, 3, 5).reshape(B, N, C * patch * patch)
    emb = xp @ params["patch_w"] + params["patch_b"]
    cls = jnp.broadcast_to(params["cls_token"].reshape(1, 1, D), (B, 1, D))
    tok = jnp.concatenate([cls, emb], axis=1) + params["pos_embed"]

    def ln(z, g, b):
        mu = z.mean(-1, keepdims=True)
        var = ((z - mu) ** 2).mean(-1, keepdims=True)
        return (z - mu) * jax.lax.rsqrt(var + eps) * g + b

    for blk in params["blocks"]:
        xn = ln(tok, blk["ln1_g"], blk["ln1_b"])
        qkv = xn @ blk["qkv_w"] + blk["qkv_b"]
        q = qkv[..., :D].reshape(B, T, heads, dh).transpose(0, 2, 1, 3) * scale
        k = qkv[..., D:2 * D].reshape(B, T, heads, dh).transpose(0, 2, 1, 3)
        v = qkv[..., 2 * D:].reshape(B, T, heads, dh).transpose(0, 2, 1, 3)
        s = jnp.einsum("bhqd,bhkd->bhqk", q, k)
        a = jax.nn.softmax(s, axis=-1)
        o = jnp.einsum("bhqk,bhkd->bhqd", a, v)
        o = o.transpose(0, 2, 1, 3).reshape(B, T, D)
        tok = tok + blk["gamma1"] * (o @ blk["proj_w"] + blk["proj_b"])
        xn2 = ln(tok, blk["ln2_g"], blk["ln2_b"])
        hmid = _gelu_tanh(xn2 @ blk["fc1_w"] + blk["fc1_b"])
        tok = tok + blk["gamma2"] * (hmid @ blk["fc2_w"] + blk["fc2_b"])

    xf = ln(tok, params["ln_g"], params["ln_b"])
    logits = xf[:, 1:, :] @ params["head_w"].reshape(D, 1) + params["head_b"]
    neg_logit = jnp.sum(jax.nn.log_sigmoid(logits), axis=1)
    return 1.0 - jnp.exp(neg_logit)


# --------------------------------------------------------------------------

if __name__ == "__main__":
    key = jax.random.PRNGKey(0)
    kx, kp = jax.random.split(key)

    B, C, H, W = 2, 3, 28, 28     # 28x28 image, patch 14 -> 2x2 = 4 patch tokens
    heads, D, depth = 2, 32, 2
    x = jax.random.normal(kx, (B, C, H, W), dtype=jnp.float32)
    params = init_params(kp, C=C, patch=14, D=D, depth=depth, mlp_ratio=4,
                         num_patches=(H // 14) * (W // 14))

    fwd = jax.jit(lambda xx, pp: dino_finegrained_classifier(xx, pp, heads=heads))
    out = jax.block_until_ready(fwd(x, params))

    assert out.shape == (B, 1) and out.dtype == jnp.float32
    assert bool(jnp.all(jnp.isfinite(out)))
    assert bool(jnp.all((out >= 0.0) & (out <= 1.0)))

    # loose tolerance: kernel uses bf16 MXU inputs + approx softmax reciprocal
    ref = dino_reference(x, params, heads=heads)
    err = float(jnp.max(jnp.abs(out - ref)))
    assert err < 3e-2, f"kernel vs f32 reference mismatch: {err}"

    print("KERNEL_OK")
</pallas_src>

<mosaic_0001>
module attributes {stable_mosaic.version = 11 : i64} {
  func.func @kernel(%arg0: i32, %arg1: i32, %arg2: memref<1x4x588xf32, #tpu.memory_space<vmem>>, %arg3: memref<588x32xbf16, #tpu.memory_space<vmem>>, %arg4: memref<5x32xf32, #tpu.memory_space<vmem>>, %arg5: memref<1x8x32xf32, #tpu.memory_space<vmem>>, %arg6: memref<1x2x32x16xbf16, #tpu.memory_space<vmem>>, %arg7: memref<1x2x32x16xbf16, #tpu.memory_space<vmem>>, %arg8: memref<1x2x32x16xbf16, #tpu.memory_space<vmem>>, %arg9: memref<1x6x16xf32, #tpu.memory_space<vmem>>, %arg10: memref<1x2x16x32xbf16, #tpu.memory_space<vmem>>, %arg11: memref<1x32x128xbf16, #tpu.memory_space<vmem>>, %arg12: memref<1x1x128xf32, #tpu.memory_space<vmem>>, %arg13: memref<1x128x32xbf16, #tpu.memory_space<vmem>>, %arg14: memref<3x32xf32, #tpu.memory_space<vmem>>, %arg15: memref<1x1xf32, #tpu.memory_space<vmem>>, %arg16: memref<1x1x1xf32, #tpu.memory_space<vmem>>, %arg17: memref<5x32xf32, #tpu.memory_space<vmem>>) attributes {dimension_semantics = [#tpu.dimension_semantics<parallel>, #tpu.dimension_semantics<arbitrary>], iteration_bounds = array<i64: 2, 2>, scalar_prefetch = 0 : i64, scratch_operands = 1 : i64, tpu.core_type = #tpu.core_type<tc>, window_params = [{transform_indices = @transform_0, window_bounds = array<i64: 1, 4, 588>}, {pipeline_mode = #tpu.pipeline_mode<synchronous>, transform_indices = @transform_1, window_bounds = array<i64: 588, 32>}, {pipeline_mode = #tpu.pipeline_mode<synchronous>, transform_indices = @transform_2, window_bounds = array<i64: 5, 32>}, {transform_indices = @transform_3, window_bounds = array<i64: 1, 8, 32>}, {transform_indices = @transform_4, window_bounds = array<i64: 1, 2, 32, 16>}, {transform_indices = @transform_5, window_bounds = array<i64: 1, 2, 32, 16>}, {transform_indices = @transform_6, window_bounds = array<i64: 1, 2, 32, 16>}, {transform_indices = @transform_7, window_bounds = array<i64: 1, 6, 16>}, {transform_indices = @transform_8, window_bounds = array<i64: 1, 2, 16, 32>}, {transform_indices = @transform_9, window_bounds = array<i64: 1, 32, 128>}, {transform_indices = @transform_10, window_bounds = array<i64: 1, 1, 128>}, {transform_indices = @transform_11, window_bounds = array<i64: 1, 128, 32>}, {pipeline_mode = #tpu.pipeline_mode<synchronous>, transform_indices = @transform_12, window_bounds = array<i64: 3, 32>}, {pipeline_mode = #tpu.pipeline_mode<synchronous>, transform_indices = @transform_13, window_bounds = array<i64: 1, 1>}, {transform_indices = @transform_14, window_bounds = array<i64: 1, 1, 1>}]} {
    %c0_i32 = arith.constant 0 : i32
    %0 = arith.cmpi eq, %arg1, %c0_i32 : i32
    %1 = arith.extui %0 : i1 to i32
    %c0_i32_0 = arith.constant 0 : i32
    %2 = arith.cmpi ne, %1, %c0_i32_0 : i32
    scf.if %2 {
      %c0_112 = arith.constant 0 : index
      %c0_113 = arith.constant 0 : index
      %c0_114 = arith.constant 0 : index
      %191 = vector.load %arg2[%c0_112, %c0_113, %c0_114] : memref<1x4x588xf32, #tpu.memory_space<vmem>>, vector<1x4x588xf32>
      %192 = vector.shape_cast %191 : vector<1x4x588xf32> to vector<4x588xf32>
      %193 = arith.truncf %192 : vector<4x588xf32> to vector<4x588xbf16>
      %c0_115 = arith.constant 0 : index
      %c0_116 = arith.constant 0 : index
      %194 = vector.load %arg3[%c0_115, %c0_116] : memref<588x32xbf16, #tpu.memory_space<vmem>>, vector<588x32xbf16>
      %cst_117 = arith.constant dense<0.000000e+00> : vector<4x32xf32>
      %195 = tpu.matmul %193, %194, %cst_117 {dimension_numbers = #tpu.dot_dimension_numbers<[1], [0], [0], [1], [0, 0, 1, 1], [], []>} : vector<4x588xbf16>, vector<588x32xbf16>, vector<4x32xf32> -> vector<4x32xf32>
      %c0_118 = arith.constant 0 : index
      %c0_119 = arith.constant 0 : index
      %196 = vector.load %arg4[%c0_118, %c0_119] : memref<5x32xf32, #tpu.memory_space<vmem>>, vector<1x32xf32>
      %c0_120 = arith.constant 0 : index
      %c0_121 = arith.constant 0 : index
      %197 = vector.load %arg17[%c0_120, %c0_121] : memref<5x32xf32, #tpu.memory_space<vmem>>, vector<1x32xf32>
      tpu.vector_store %arg17[%c0_120, %c0_121], %196 {strides = array<i32>} : memref<5x32xf32, #tpu.memory_space<vmem>>, vector<1x32xf32>,
      %c1_122 = arith.constant 1 : index
      %c0_123 = arith.constant 0 : index
      %198 = vector.load %arg4[%c1_122, %c0_123] : memref<5x32xf32, #tpu.memory_space<vmem>>, vector<4x32xf32>
      %199 = arith.addf %195, %198 : vector<4x32xf32>
      %c1_124 = arith.constant 1 : index
      %c0_125 = arith.constant 0 : index
      %200 = vector.load %arg17[%c1_124, %c0_125] : memref<5x32xf32, #tpu.memory_space<vmem>>, vector<4x32xf32>
      tpu.vector_store %arg17[%c1_124, %c0_125], %199 {strides = array<i32>} : memref<5x32xf32, #tpu.memory_space<vmem>>, vector<4x32xf32>,
    } else {
    }
    %c0 = arith.constant 0 : index
    %c0_1 = arith.constant 0 : index
    %3 = vector.load %arg17[%c0, %c0_1] : memref<5x32xf32, #tpu.memory_space<vmem>>, vector<5x32xf32>
    %c0_2 = arith.constant 0 : index
    %c0_3 = arith.constant 0 : index
    %c0_4 = arith.constant 0 : index
    %4 = vector.load %arg5[%c0_2, %c0_3, %c0_4] : memref<1x8x32xf32, #tpu.memory_space<vmem>>, vector<1x1x32xf32>
    %5 = vector.shape_cast %4 : vector<1x1x32xf32> to vector<1x32xf32>
    %c0_5 = arith.constant 0 : index
    %c1 = arith.constant 1 : index
    %c0_6 = arith.constant 0 : index
    %6 = vector.load %arg5[%c0_5, %c1, %c0_6] : memref<1x8x32xf32, #tpu.memory_space<vmem>>, vector<1x1x32xf32>
    %7 = vector.shape_cast %6 : vector<1x1x32xf32> to vector<1x32xf32>
    %c0_7 = arith.constant 0 : index
    %c2 = arith.constant 2 : index
    %c0_8 = arith.constant 0 : index
    %8 = vector.load %arg5[%c0_7, %c2, %c0_8] : memref<1x8x32xf32, #tpu.memory_space<vmem>>, vector<1x1x32xf32>
    %9 = vector.shape_cast %8 : vector<1x1x32xf32> to vector<1x32xf32>
    %c0_9 = arith.constant 0 : index
    %c3 = arith.constant 3 : index
    %c0_10 = arith.constant 0 : index
    %10 = vector.load %arg5[%c0_9, %c3, %c0_10] : memref<1x8x32xf32, #tpu.memory_space<vmem>>, vector<1x1x32xf32>
    %11 = vector.shape_cast %10 : vector<1x1x32xf32> to vector<1x32xf32>
    %c0_11 = arith.constant 0 : index
    %c4 = arith.constant 4 : index
    %c0_12 = arith.constant 0 : index
    %12 = vector.load %arg5[%c0_11, %c4, %c0_12] : memref<1x8x32xf32, #tpu.memory_space<vmem>>, vector<1x1x32xf32>
    %13 = vector.shape_cast %12 : vector<1x1x32xf32> to vector<1x32xf32>
    %c0_13 = arith.constant 0 : index
    %c5 = arith.constant 5 : index
    %c0_14 = arith.constant 0 : index
    %14 = vector.load %arg5[%c0_13, %c5, %c0_14] : memref<1x8x32xf32, #tpu.memory_space<vmem>>, vector<1x1x32xf32>
    %15 = vector.shape_cast %14 : vector<1x1x32xf32> to vector<1x32xf32>
    %c0_15 = arith.constant 0 : index
    %c6 = arith.constant 6 : index
    %c0_16 = arith.constant 0 : index
    %16 = vector.load %arg5[%c0_15, %c6, %c0_16] : memref<1x8x32xf32, #tpu.memory_space<vmem>>, vector<1x1x32xf32>
    %17 = vector.shape_cast %16 : vector<1x1x32xf32> to vector<1x32xf32>
    %c0_17 = arith.constant 0 : index
    %c7 = arith.constant 7 : index
    %c0_18 = arith.constant 0 : index
    %18 = vector.load %arg5[%c0_17, %c7, %c0_18] : memref<1x8x32xf32, #tpu.memory_space<vmem>>, vector<1x1x32xf32>
    %19 = vector.shape_cast %18 : vector<1x1x32xf32> to vector<1x32xf32>
    %cst = arith.constant dense<0.000000e+00> : vector<5xf32>
    %20 = vector.multi_reduction <add>, %3, %cst [1] : vector<5x32xf32> to vector<5xf32>
    %21 = vector.shape_cast %20 : vector<5xf32> to vector<5x1xf32>
    %cst_19 = arith.constant 3.200000e+01 : f32
    %22 = vector.broadcast %cst_19 : f32 to vector<5x1xf32>
    %23 = arith.divf %21, %22 : vector<5x1xf32>
    %24 = vector.broadcast %23 : vector<5x1xf32> to vector<5x32xf32>
    %25 = arith.subf %3, %24 : vector<5x32xf32>
    %26 = vector.broadcast %23 : vector<5x1xf32> to vector<5x32xf32>
    %27 = arith.subf %3, %26 : vector<5x32xf32>
    %28 = arith.mulf %25, %27 : vector<5x32xf32>
    %cst_20 = arith.constant dense<0.000000e+00> : vector<5xf32>
    %29 = vector.multi_reduction <add>, %28, %cst_20 [1] : vector<5x32xf32> to vector<5xf32>
    %30 = vector.shape_cast %29 : vector<5xf32> to vector<5x1xf32>
    %cst_21 = arith.constant 3.200000e+01 : f32
    %31 = vector.broadcast %cst_21 : f32 to vector<5x1xf32>
    %32 = arith.divf %30, %31 : vector<5x1xf32>
    %33 = vector.broadcast %23 : vector<5x1xf32> to vector<5x32xf32>
    %34 = arith.subf %3, %33 : vector<5x32xf32>
    %cst_22 = arith.constant 9.99999997E-7 : f32
    %35 = vector.broadcast %cst_22 : f32 to vector<5x1xf32>
    %36 = arith.addf %32, %35 : vector<5x1xf32>
    %37 = math.rsqrt %36 : vector<5x1xf32>
    %38 = vector.broadcast %37 : vector<5x1xf32> to vector<5x32xf32>
    %39 = arith.mulf %34, %38 : vector<5x32xf32>
    %40 = vector.broadcast %5 : vector<1x32xf32> to vector<5x32xf32>
    %41 = arith.mulf %39, %40 : vector<5x32xf32>
    %42 = vector.broadcast %7 : vector<1x32xf32> to vector<5x32xf32>
    %43 = arith.addf %41, %42 : vector<5x32xf32>
    %44 = arith.truncf %43 : vector<5x32xf32> to vector<5x32xbf16>
    %c0_23 = arith.constant 0 : index
    %c0_24 = arith.constant 0 : index
    %c0_25 = arith.constant 0 : index
    %45 = vector.load %arg9[%c0_23, %c0_24, %c0_25] : memref<1x6x16xf32, #tpu.memory_space<vmem>>, vector<1x1x16xf32>
    %46 = vector.shape_cast %45 : vector<1x1x16xf32> to vector<1x16xf32>
    %c0_26 = arith.constant 0 : index
    %c1_27 = arith.constant 1 : index
    %c0_28 = arith.constant 0 : index
    %47 = vector.load %arg9[%c0_26, %c1_27, %c0_28] : memref<1x6x16xf32, #tpu.memory_space<vmem>>, vector<1x1x16xf32>
    %48 = vector.shape_cast %47 : vector<1x1x16xf32> to vector<1x16xf32>
    %c0_29 = arith.constant 0 : index
    %c2_30 = arith.constant 2 : index
    %c0_31 = arith.constant 0 : index
    %49 = vector.load %arg9[%c0_29, %c2_30, %c0_31] : memref<1x6x16xf32, #tpu.memory_space<vmem>>, vector<1x1x16xf32>
    %50 = vector.shape_cast %49 : vector<1x1x16xf32> to vector<1x16xf32>
    %c0_32 = arith.constant 0 : index
    %c0_33 = arith.constant 0 : index
    %c0_34 = arith.constant 0 : index
    %c0_35 = arith.constant 0 : index
    %51 = vector.load %arg6[%c0_32, %c0_33, %c0_34, %c0_35] : memref<1x2x32x16xbf16, #tpu.memory_space<vmem>>, vector<1x1x32x16xbf16>
    %52 = vector.shape_cast %51 : vector<1x1x32x16xbf16> to vector<32x16xbf16>
    %cst_36 = arith.constant dense<0.000000e+00> : vector<5x16xf32>
    %53 = tpu.matmul %44, %52, %cst_36 {dimension_numbers = #tpu.dot_dimension_numbers<[1], [0], [0], [1], [0, 0, 1, 1], [], []>} : vector<5x32xbf16>, vector<32x16xbf16>, vector<5x16xf32> -> vector<5x16xf32>
    %54 = vector.broadcast %46 : vector<1x16xf32> to vector<5x16xf32>
    %55 = arith.addf %53, %54 : vector<5x16xf32>
    %56 = arith.truncf %55 : vector<5x16xf32> to vector<5x16xbf16>
    %c0_37 = arith.constant 0 : index
    %c0_38 = arith.constant 0 : index
    %c0_39 = arith.constant 0 : index
    %c0_40 = arith.constant 0 : index
    %57 = vector.load %arg7[%c0_37, %c0_38, %c0_39, %c0_40] : memref<1x2x32x16xbf16, #tpu.memory_space<vmem>>, vector<1x1x32x16xbf16>
    %58 = vector.shape_cast %57 : vector<1x1x32x16xbf16> to vector<32x16xbf16>
    %cst_41 = arith.constant dense<0.000000e+00> : vector<5x16xf32>
    %59 = tpu.matmul %44, %58, %cst_41 {dimension_numbers = #tpu.dot_dimension_numbers<[1], [0], [0], [1], [0, 0, 1, 1], [], []>} : vector<5x32xbf16>, vector<32x16xbf16>, vector<5x16xf32> -> vector<5x16xf32>
    %60 = vector.broadcast %48 : vector<1x16xf32> to vector<5x16xf32>
    %61 = arith.addf %59, %60 : vector<5x16xf32>
    %62 = arith.truncf %61 : vector<5x16xf32> to vector<5x16xbf16>
    %c0_42 = arith.constant 0 : index
    %c0_43 = arith.constant 0 : index
    %c0_44 = arith.constant 0 : index
    %c0_45 = arith.constant 0 : index
    %63 = vector.load %arg8[%c0_42, %c0_43, %c0_44, %c0_45] : memref<1x2x32x16xbf16, #tpu.memory_space<vmem>>, vector<1x1x32x16xbf16>
    %64 = vector.shape_cast %63 : vector<1x1x32x16xbf16> to vector<32x16xbf16>
    %cst_46 = arith.constant dense<0.000000e+00> : vector<5x16xf32>
    %65 = tpu.matmul %44, %64, %cst_46 {dimension_numbers = #tpu.dot_dimension_numbers<[1], [0], [0], [1], [0, 0, 1, 1], [], []>} : vector<5x32xbf16>, vector<32x16xbf16>, vector<5x16xf32> -> vector<5x16xf32>
    %66 = vector.broadcast %50 : vector<1x16xf32> to vector<5x16xf32>
    %67 = arith.addf %65, %66 : vector<5x16xf32>
    %68 = arith.truncf %67 : vector<5x16xf32> to vector<5x16xbf16>
    %cst_47 = arith.constant dense<0.000000e+00> : vector<5x5xf32>
    %69 = tpu.matmul %56, %62, %cst_47 {dimension_numbers = #tpu.dot_dimension_numbers<[1], [1], [0], [0], [0, 0, 1, 0], [], []>} : vector<5x16xbf16>, vector<5x16xbf16>, vector<5x5xf32> -> vector<5x5xf32>
    %cst_48 = arith.constant dense<0xFF800000> : vector<5xf32>
    %70 = vector.multi_reduction <maximumf>, %69, %cst_48 [1] : vector<5x5xf32> to vector<5xf32>
    %71 = vector.shape_cast %70 : vector<5xf32> to vector<5x1xf32>
    %72 = vector.broadcast %71 : vector<5x1xf32> to vector<5x5xf32>
    %73 = arith.subf %69, %72 : vector<5x5xf32>
    %74 = math.exp %73 : vector<5x5xf32>
    %cst_49 = arith.constant dense<0.000000e+00> : vector<5xf32>
    %75 = vector.multi_reduction <add>, %74, %cst_49 [1] : vector<5x5xf32> to vector<5xf32>
    %76 = vector.shape_cast %75 : vector<5xf32> to vector<5x1xf32>
    %77 = tpu.reciprocal %76 {approx = true} : vector<5x1xf32> -> vector<5x1xf32>
    %78 = vector.broadcast %77 : vector<5x1xf32> to vector<5x5xf32>
    %79 = arith.mulf %74, %78 : vector<5x5xf32>
    %80 = arith.truncf %79 : vector<5x5xf32> to vector<5x5xbf16>
    %cst_50 = arith.constant dense<0.000000e+00> : vector<5x16xf32>
    %81 = tpu.matmul %80, %68, %cst_50 {dimension_numbers = #tpu.dot_dimension_numbers<[1], [0], [0], [1], [0, 0, 1, 1], [], []>} : vector<5x5xbf16>, vector<5x16xbf16>, vector<5x16xf32> -> vector<5x16xf32>
    %82 = arith.truncf %81 : vector<5x16xf32> to vector<5x16xbf16>
    %c0_51 = arith.constant 0 : index
    %c0_52 = arith.constant 0 : index
    %c0_53 = arith.constant 0 : index
    %c0_54 = arith.constant 0 : index
    %83 = vector.load %arg10[%c0_51, %c0_52, %c0_53, %c0_54] : memref<1x2x16x32xbf16, #tpu.memory_space<vmem>>, vector<1x1x16x32xbf16>
    %84 = vector.shape_cast %83 : vector<1x1x16x32xbf16> to vector<16x32xbf16>
    %cst_55 = arith.constant dense<0.000000e+00> : vector<5x32xf32>
    %85 = tpu.matmul %82, %84, %cst_55 {dimension_numbers = #tpu.dot_dimension_numbers<[1], [0], [0], [1], [0, 0, 1, 1], [], []>} : vector<5x16xbf16>, vector<16x32xbf16>, vector<5x32xf32> -> vector<5x32xf32>
    %c0_56 = arith.constant 0 : index
    %c3_57 = arith.constant 3 : index
    %c0_58 = arith.constant 0 : index
    %86 = vector.load %arg9[%c0_56, %c3_57, %c0_58] : memref<1x6x16xf32, #tpu.memory_space<vmem>>, vector<1x1x16xf32>
    %87 = vector.shape_cast %86 : vector<1x1x16xf32> to vector<1x16xf32>
    %c0_59 = arith.constant 0 : index
    %c4_60 = arith.constant 4 : index
    %c0_61 = arith.constant 0 : index
    %88 = vector.load %arg9[%c0_59, %c4_60, %c0_61] : memref<1x6x16xf32, #tpu.memory_space<vmem>>, vector<1x1x16xf32>
    %89 = vector.shape_cast %88 : vector<1x1x16xf32> to vector<1x16xf32>
    %c0_62 = arith.constant 0 : index
    %c5_63 = arith.constant 5 : index
    %c0_64 = arith.constant 0 : index
    %90 = vector.load %arg9[%c0_62, %c5_63, %c0_64] : memref<1x6x16xf32, #tpu.memory_space<vmem>>, vector<1x1x16xf32>
    %91 = vector.shape_cast %90 : vector<1x1x16xf32> to vector<1x16xf32>
    %c0_65 = arith.constant 0 : index
    %c1_66 = arith.constant 1 : index
    %c0_67 = arith.constant 0 : index
    %c0_68 = arith.constant 0 : index
    %92 = vector.load %arg6[%c0_65, %c1_66, %c0_67, %c0_68] : memref<1x2x32x16xbf16, #tpu.memory_space<vmem>>, vector<1x1x32x16xbf16>
    %93 = vector.shape_cast %92 : vector<1x1x32x16xbf16> to vector<32x16xbf16>
    %cst_69 = arith.constant dense<0.000000e+00> : vector<5x16xf32>
    %94 = tpu.matmul %44, %93, %cst_69 {dimension_numbers = #tpu.dot_dimension_numbers<[1], [0], [0], [1], [0, 0, 1, 1], [], []>} : vector<5x32xbf16>, vector<32x16xbf16>, vector<5x16xf32> -> vector<5x16xf32>
    %95 = vector.broadcast %87 : vector<1x16xf32> to vector<5x16xf32>
    %96 = arith.addf %94, %95 : vector<5x16xf32>
    %97 = arith.truncf %96 : vector<5x16xf32> to vector<5x16xbf16>
    %c0_70 = arith.constant 0 : index
    %c1_71 = arith.constant 1 : index
    %c0_72 = arith.constant 0 : index
    %c0_73 = arith.constant 0 : index
    %98 = vector.load %arg7[%c0_70, %c1_71, %c0_72, %c0_73] : memref<1x2x32x16xbf16, #tpu.memory_space<vmem>>, vector<1x1x32x16xbf16>
    %99 = vector.shape_cast %98 : vector<1x1x32x16xbf16> to vector<32x16xbf16>
    %cst_74 = arith.constant dense<0.000000e+00> : vector<5x16xf32>
    %100 = tpu.matmul %44, %99, %cst_74 {dimension_numbers = #tpu.dot_dimension_numbers<[1], [0], [0], [1], [0, 0, 1, 1], [], []>} : vector<5x32xbf16>, vector<32x16xbf16>, vector<5x16xf32> -> vector<5x16xf32>
    %101 = vector.broadcast %89 : vector<1x16xf32> to vector<5x16xf32>
    %102 = arith.addf %100, %101 : vector<5x16xf32>
    %103 = arith.truncf %102 : vector<5x16xf32> to vector<5x16xbf16>
    %c0_75 = arith.constant 0 : index
    %c1_76 = arith.constant 1 : index
    %c0_77 = arith.constant 0 : index
    %c0_78 = arith.constant 0 : index
    %104 = vector.load %arg8[%c0_75, %c1_76, %c0_77, %c0_78] : memref<1x2x32x16xbf16, #tpu.memory_space<vmem>>, vector<1x1x32x16xbf16>
    %105 = vector.shape_cast %104 : vector<1x1x32x16xbf16> to vector<32x16xbf16>
    %cst_79 = arith.constant dense<0.000000e+00> : vector<5x16xf32>
    %106 = tpu.matmul %44, %105, %cst_79 {dimension_numbers = #tpu.dot_dimension_numbers<[1], [0], [0], [1], [0, 0, 1, 1], [], []>} : vector<5x32xbf16>, vector<32x16xbf16>, vector<5x16xf32> -> vector<5x16xf32>
    %107 = vector.broadcast %91 : vector<1x16xf32> to vector<5x16xf32>
    %108 = arith.addf %106, %107 : vector<5x16xf32>
    %109 = arith.truncf %108 : vector<5x16xf32> to vector<5x16xbf16>
    %cst_80 = arith.constant dense<0.000000e+00> : vector<5x5xf32>
    %110 = tpu.matmul %97, %103, %cst_80 {dimension_numbers = #tpu.dot_dimension_numbers<[1], [1], [0], [0], [0, 0, 1, 0], [], []>} : vector<5x16xbf16>, vector<5x16xbf16>, vector<5x5xf32> -> vector<5x5xf32>
    %cst_81 = arith.constant dense<0xFF800000> : vector<5xf32>
    %111 = vector.multi_reduction <maximumf>, %110, %cst_81 [1] : vector<5x5xf32> to vector<5xf32>
    %112 = vector.shape_cast %111 : vector<5xf32> to vector<5x1xf32>
    %113 = vector.broadcast %112 : vector<5x1xf32> to vector<5x5xf32>
    %114 = arith.subf %110, %113 : vector<5x5xf32>
    %115 = math.exp %114 : vector<5x5xf32>
    %cst_82 = arith.constant dense<0.000000e+00> : vector<5xf32>
    %116 = vector.multi_reduction <add>, %115, %cst_82 [1] : vector<5x5xf32> to vector<5xf32>
    %117 = vector.shape_cast %116 : vector<5xf32> to vector<5x1xf32>
    %118 = tpu.reciprocal %117 {approx = true} : vector<5x1xf32> -> vector<5x1xf32>
    %119 = vector.broadcast %118 : vector<5x1xf32> to vector<5x5xf32>
    %120 = arith.mulf %115, %119 : vector<5x5xf32>
    %121 = arith.truncf %120 : vector<5x5xf32> to vector<5x5xbf16>
    %cst_83 = arith.constant dense<0.000000e+00> : vector<5x16xf32>
    %122 = tpu.matmul %121, %109, %cst_83 {dimension_numbers = #tpu.dot_dimension_numbers<[1], [0], [0], [1], [0, 0, 1, 1], [], []>} : vector<5x5xbf16>, vector<5x16xbf16>, vector<5x16xf32> -> vector<5x16xf32>
    %123 = arith.truncf %122 : vector<5x16xf32> to vector<5x16xbf16>
    %c0_84 = arith.constant 0 : index
    %c1_85 = arith.constant 1 : index
    %c0_86 = arith.constant 0 : index
    %c0_87 = arith.constant 0 : index
    %124 = vector.load %arg10[%c0_84, %c1_85, %c0_86, %c0_87] : memref<1x2x16x32xbf16, #tpu.memory_space<vmem>>, vector<1x1x16x32xbf16>
    %125 = vector.shape_cast %124 : vector<1x1x16x32xbf16> to vector<16x32xbf16>
    %cst_88 = arith.constant dense<0.000000e+00> : vector<5x32xf32>
    %126 = tpu.matmul %123, %125, %cst_88 {dimension_numbers = #tpu.dot_dimension_numbers<[1], [0], [0], [1], [0, 0, 1, 1], [], []>} : vector<5x16xbf16>, vector<16x32xbf16>, vector<5x32xf32> -> vector<5x32xf32>
    %127 = arith.addf %85, %126 : vector<5x32xf32>
    %128 = vector.broadcast %17 : vector<1x32xf32> to vector<5x32xf32>
    %129 = arith.addf %127, %128 : vector<5x32xf32>
    %130 = vector.broadcast %9 : vector<1x32xf32> to vector<5x32xf32>
    %131 = arith.mulf %130, %129 : vector<5x32xf32>
    %132 = arith.addf %3, %131 : vector<5x32xf32>
    %cst_89 = arith.constant dense<0.000000e+00> : vector<5xf32>
    %133 = vector.multi_reduction <add>, %132, %cst_89 [1] : vector<5x32xf32> to vector<5xf32>
    %134 = vector.shape_cast %133 : vector<5xf32> to vector<5x1xf32>
    %cst_90 = arith.constant 3.200000e+01 : f32
    %135 = vector.broadcast %cst_90 : f32 to vector<5x1xf32>
    %136 = arith.divf %134, %135 : vector<5x1xf32>
    %137 = vector.broadcast %136 : vector<5x1xf32> to vector<5x32xf32>
    %138 = arith.subf %132, %137 : vector<5x32xf32>
    %139 = vector.broadcast %136 : vector<5x1xf32> to vector<5x32xf32>
    %140 = arith.subf %132, %139 : vector<5x32xf32>
    %141 = arith.mulf %138, %140 : vector<5x32xf32>
    %cst_91 = arith.constant dense<0.000000e+00> : vector<5xf32>
    %142 = vector.multi_reduction <add>, %141, %cst_91 [1] : vector<5x32xf32> to vector<5xf32>
    %143 = vector.shape_cast %142 : vector<5xf32> to vector<5x1xf32>
    %cst_92 = arith.constant 3.200000e+01 : f32
    %144 = vector.broadcast %cst_92 : f32 to vector<5x1xf32>
    %145 = arith.divf %143, %144 : vector<5x1xf32>
    %146 = vector.broadcast %136 : vector<5x1xf32> to vector<5x32xf32>
    %147 = arith.subf %132, %146 : vector<5x32xf32>
    %cst_93 = arith.constant 9.99999997E-7 : f32
    %148 = vector.broadcast %cst_93 : f32 to vector<5x1xf32>
    %149 = arith.addf %145, %148 : vector<5x1xf32>
    %150 = math.rsqrt %149 : vector<5x1xf32>
    %151 = vector.broadcast %150 : vector<5x1xf32> to vector<5x32xf32>
    %152 = arith.mulf %147, %151 : vector<5x32xf32>
    %153 = vector.broadcast %11 : vector<1x32xf32> to vector<5x32xf32>
    %154 = arith.mulf %152, %153 : vector<5x32xf32>
    %155 = vector.broadcast %13 : vector<1x32xf32> to vector<5x32xf32>
    %156 = arith.addf %154, %155 : vector<5x32xf32>
    %157 = arith.truncf %156 : vector<5x32xf32> to vector<5x32xbf16>
    %c0_94 = arith.constant 0 : index
    %c0_95 = arith.constant 0 : index
    %c0_96 = arith.constant 0 : index
    %158 = vector.load %arg11[%c0_94, %c0_95, %c0_96] : memref<1x32x128xbf16, #tpu.memory_space<vmem>>, vector<1x32x128xbf16>
    %159 = vector.shape_cast %158 : vector<1x32x128xbf16> to vector<32x128xbf16>
    %cst_97 = arith.constant dense<0.000000e+00> : vector<5x128xf32>
    %160 = tpu.matmul %157, %159, %cst_97 {dimension_numbers = #tpu.dot_dimension_numbers<[1], [0], [0], [1], [0, 0, 1, 1], [], []>} : vector<5x32xbf16>, vector<32x128xbf16>, vector<5x128xf32> -> vector<5x128xf32>
    %c0_98 = arith.constant 0 : index
    %c0_99 = arith.constant 0 : index
    %c0_100 = arith.constant 0 : index
    %161 = vector.load %arg12[%c0_98, %c0_99, %c0_100] : memref<1x1x128xf32, #tpu.memory_space<vmem>>, vector<1x1x128xf32>
    %162 = vector.shape_cast %161 : vector<1x1x128xf32> to vector<1x128xf32>
    %163 = vector.broadcast %162 : vector<1x128xf32> to vector<5x128xf32>
    %164 = arith.addf %160, %163 : vector<5x128xf32>
    %cst_101 = arith.constant 5.000000e-01 : f32
    %165 = vector.broadcast %cst_101 : f32 to vector<5x128xf32>
    %166 = arith.mulf %165, %164 : vector<5x128xf32>
    %cst_102 = arith.constant 4.471500e-02 : f32
    %167 = vector.broadcast %cst_102 : f32 to vector<5x128xf32>
    %168 = arith.mulf %167, %164 : vector<5x128xf32>
    %169 = arith.mulf %168, %164 : vector<5x128xf32>
    %170 = arith.mulf %169, %164 : vector<5x128xf32>
    %171 = arith.addf %164, %170 : vector<5x128xf32>
    %cst_103 = arith.constant 0.797884583 : f32
    %172 = vector.broadcast %cst_103 : f32 to vector<5x128xf32>
    %173 = arith.mulf %172, %171 : vector<5x128xf32>
    %174 = math.tanh %173 : vector<5x128xf32>
    %cst_104 = arith.constant 1.000000e+00 : f32
    %175 = vector.broadcast %cst_104 : f32 to vector<5x128xf32>
    %176 = arith.addf %175, %174 : vector<5x128xf32>
    %177 = arith.mulf %166, %176 : vector<5x128xf32>
    %178 = arith.truncf %177 : vector<5x128xf32> to vector<5x128xbf16>
    %c0_105 = arith.constant 0 : index
    %c0_106 = arith.constant 0 : index
    %c0_107 = arith.constant 0 : index
    %179 = vector.load %arg13[%c0_105, %c0_106, %c0_107] : memref<1x128x32xbf16, #tpu.memory_space<vmem>>, vector<1x128x32xbf16>
    %180 = vector.shape_cast %179 : vector<1x128x32xbf16> to vector<128x32xbf16>
    %cst_108 = arith.constant dense<0.000000e+00> : vector<5x32xf32>
    %181 = tpu.matmul %178, %180, %cst_108 {dimension_numbers = #tpu.dot_dimension_numbers<[1], [0], [0], [1], [0, 0, 1, 1], [], []>} : vector<5x128xbf16>, vector<128x32xbf16>, vector<5x32xf32> -> vector<5x32xf32>
    %182 = vector.broadcast %19 : vector<1x32xf32> to vector<5x32xf32>
    %183 = arith.addf %181, %182 : vector<5x32xf32>
    %184 = vector.broadcast %15 : vector<1x32xf32> to vector<5x32xf32>
    %185 = arith.mulf %184, %183 : vector<5x32xf32>
    %186 = arith.addf %132, %185 : vector<5x32xf32>
    %c0_109 = arith.constant 0 : index
    %c0_110 = arith.constant 0 : index
    %187 = vector.load %arg17[%c0_109, %c0_110] : memref<5x32xf32, #tpu.memory_space<vmem>>, vector<5x32xf32>
    tpu.vector_store %arg17[%c0_109, %c0_110], %186 {strides = array<i32>} : memref<5x32xf32, #tpu.memory_space<vmem>>, vector<5x32xf32>,
    %c1_i32 = arith.constant 1 : i32
    %188 = arith.cmpi eq, %arg1, %c1_i32 : i32
    %189 = arith.extui %188 : i1 to i32
    %c0_i32_111 = arith.constant 0 : i32
    %190 = arith.cmpi ne, %189, %c0_i32_111 : i32
    scf.if %190 {
      %c0_112 = arith.constant 0 : index
      %c0_113 = arith.constant 0 : index
      %191 = vector.load %arg14[%c0_112, %c0_113] : memref<3x32xf32, #tpu.memory_space<vmem>>, vector<1x32xf32>
      %c1_114 = arith.constant 1 : index
      %c0_115 = arith.constant 0 : index
      %192 = vector.load %arg14[%c1_114, %c0_115] : memref<3x32xf32, #tpu.memory_space<vmem>>, vector<1x32xf32>
      %cst_116 = arith.constant dense<0.000000e+00> : vector<5xf32>
      %193 = vector.multi_reduction <add>, %186, %cst_116 [1] : vector<5x32xf32> to vector<5xf32>
      %194 = vector.shape_cast %193 : vector<5xf32> to vector<5x1xf32>
      %cst_117 = arith.constant 3.200000e+01 : f32
      %195 = vector.broadcast %cst_117 : f32 to vector<5x1xf32>
      %196 = arith.divf %194, %195 : vector<5x1xf32>
      %197 = vector.broadcast %196 : vector<5x1xf32> to vector<5x32xf32>
      %198 = arith.subf %186, %197 : vector<5x32xf32>
      %199 = vector.broadcast %196 : vector<5x1xf32> to vector<5x32xf32>
      %200 = arith.subf %186, %199 : vector<5x32xf32>
      %201 = arith.mulf %198, %200 : vector<5x32xf32>
      %cst_118 = arith.constant dense<0.000000e+00> : vector<5xf32>
      %202 = vector.multi_reduction <add>, %201, %cst_118 [1] : vector<5x32xf32> to vector<5xf32>
      %203 = vector.shape_cast %202 : vector<5xf32> to vector<5x1xf32>
      %cst_119 = arith.constant 3.200000e+01 : f32
      %204 = vector.broadcast %cst_119 : f32 to vector<5x1xf32>
      %205 = arith.divf %203, %204 : vector<5x1xf32>
      %206 = vector.broadcast %196 : vector<5x1xf32> to vector<5x32xf32>
      %207 = arith.subf %186, %206 : vector<5x32xf32>
      %cst_120 = arith.constant 9.99999997E-7 : f32
      %208 = vector.broadcast %cst_120 : f32 to vector<5x1xf32>
      %209 = arith.addf %205, %208 : vector<5x1xf32>
      %210 = math.rsqrt %209 : vector<5x1xf32>
      %211 = vector.broadcast %210 : vector<5x1xf32> to vector<5x32xf32>
      %212 = arith.mulf %207, %211 : vector<5x32xf32>
      %213 = vector.broadcast %191 : vector<1x32xf32> to vector<5x32xf32>
      %214 = arith.mulf %212, %213 : vector<5x32xf32>
      %215 = vector.broadcast %192 : vector<1x32xf32> to vector<5x32xf32>
      %216 = arith.addf %214, %215 : vector<5x32xf32>
      %c2_121 = arith.constant 2 : index
      %c0_122 = arith.constant 0 : index
      %217 = vector.load %arg14[%c2_121, %c0_122] : memref<3x32xf32, #tpu.memory_space<vmem>>, vector<1x32xf32>
      %218 = vector.broadcast %217 : vector<1x32xf32> to vector<5x32xf32>
      %219 = arith.mulf %216, %218 : vector<5x32xf32>
      %cst_123 = arith.constant dense<0.000000e+00> : vector<5xf32>
      %220 = vector.multi_reduction <add>, %219, %cst_123 [1] : vector<5x32xf32> to vector<5xf32>
      %221 = vector.shape_cast %220 : vector<5xf32> to vector<5x1xf32>
      %c0_124 = arith.constant 0 : index
      %c0_125 = arith.constant 0 : index
      %222 = vector.load %arg15[%c0_124, %c0_125] : memref<1x1xf32, #tpu.memory_space<vmem>>, vector<1x1xf32>
      %223 = vector.broadcast %222 : vector<1x1xf32> to vector<5x1xf32>
      %224 = arith.addf %221, %223 : vector<5x1xf32>
      %cst_126 = arith.constant 0.000000e+00 : f32
      %225 = vector.broadcast %cst_126 : f32 to vector<5x1xf32>
      %226 = arith.minimumf %224, %225 : vector<5x1xf32>
      %227 = math.absf %224 : vector<5x1xf32>
      %cst_127 = arith.constant 0.000000e+00 : f32
      %228 = vector.broadcast %cst_127 : f32 to vector<5x1xf32>
      %229 = arith.subf %228, %227 : vector<5x1xf32>
      %230 = math.exp %229 : vector<5x1xf32>
      %231 = math.log1p %230 : vector<5x1xf32>
      %232 = arith.subf %226, %231 : vector<5x1xf32>
      %233 = tpu.iota {dimensions = array<i32: 0>} : vector<5x1xi32>
      %c1_i32_128 = arith.constant 1 : i32
      %234 = vector.broadcast %c1_i32_128 : i32 to vector<5x1xi32>
      %235 = arith.cmpi sge, %233, %234 : vector<5x1xi32>
      %236 = arith.extui %235 : vector<5x1xi1> to vector<5x1xi32>
      %237 = arith.sitofp %236 : vector<5x1xi32> to vector<5x1xf32>
      %238 = arith.mulf %232, %237 : vector<5x1xf32>
      %cst_129 = arith.constant dense<0.000000e+00> : vector<1xf32>
      %239 = vector.multi_reduction <add>, %238, %cst_129 [0] : vector<5x1xf32> to vector<1xf32>
      %240 = vector.shape_cast %239 : vector<1xf32> to vector<1x1xf32>
      %241 = math.exp %240 : vector<1x1xf32>
      %cst_130 = arith.constant 1.000000e+00 : f32
      %242 = vector.broadcast %cst_130 : f32 to vector<1x1xf32>
      %243 = arith.subf %242, %241 : vector<1x1xf32>
      %c0_131 = arith.constant 0 : index
      %c0_132 = arith.constant 0 : index
      %c0_133 = arith.constant 0 : index
      %244 = vector.load %arg16[%c0_131, %c0_132, %c0_133] : memref<1x1x1xf32, #tpu.memory_space<vmem>>, vector<1x1x1xf32>
      %245 = vector.shape_cast %244 : vector<1x1x1xf32> to vector<1x1xf32>
      %246 = vector.shape_cast %243 : vector<1x1xf32> to vector<1x1x1xf32>
      tpu.vector_store %arg16[%c0_131, %c0_132, %c0_133], %246 {strides = array<i32>} : memref<1x1x1xf32, #tpu.memory_space<vmem>>, vector<1x1x1xf32>,
    } else {
    }
    return
  }
  func.func @transform_0(%arg0: i32, %arg1: i32) -> (i32, i32, i32) {
    %c0_i32 = arith.constant 0 : i32
    %c0_i32_0 = arith.constant 0 : i32
    %c0_i32_1 = arith.constant 0 : i32
    return %arg0, %c0_i32, %c0_i32_0 : i32, i32, i32
  }
  func.func @transform_1(%arg0: i32, %arg1: i32) -> (i32, i32) {
    %c0_i32 = arith.constant 0 : i32
    %c0_i32_0 = arith.constant 0 : i32
    %c0_i32_1 = arith.constant 0 : i32
    return %c0_i32, %c0_i32_0 : i32, i32
  }
  func.func @transform_2(%arg0: i32, %arg1: i32) -> (i32, i32) {
    %c0_i32 = arith.constant 0 : i32
    %c0_i32_0 = arith.constant 0 : i32
    %c0_i32_1 = arith.constant 0 : i32
    return %c0_i32, %c0_i32_0 : i32, i32
  }
  func.func @transform_3(%arg0: i32, %arg1: i32) -> (i32, i32, i32) {
    %c0_i32 = arith.constant 0 : i32
    %c0_i32_0 = arith.constant 0 : i32
    %c0_i32_1 = arith.constant 0 : i32
    return %arg1, %c0_i32, %c0_i32_0 : i32, i32, i32
  }
  func.func @transform_4(%arg0: i32, %arg1: i32) -> (i32, i32, i32, i32) {
    %c0_i32 = arith.constant 0 : i32
    %c0_i32_0 = arith.constant 0 : i32
    %c0_i32_1 = arith.constant 0 : i32
    %c0_i32_2 = arith.constant 0 : i32
    return %arg1, %c0_i32, %c0_i32_0, %c0_i32_1 : i32, i32, i32, i32
  }
  func.func @transform_5(%arg0: i32, %arg1: i32) -> (i32, i32, i32, i32) {
    %c0_i32 = arith.constant 0 : i32
    %c0_i32_0 = arith.constant 0 : i32
    %c0_i32_1 = arith.constant 0 : i32
    %c0_i32_2 = arith.constant 0 : i32
    return %arg1, %c0_i32, %c0_i32_0, %c0_i32_1 : i32, i32, i32, i32
  }
  func.func @transform_6(%arg0: i32, %arg1: i32) -> (i32, i32, i32, i32) {
    %c0_i32 = arith.constant 0 : i32
    %c0_i32_0 = arith.constant 0 : i32
    %c0_i32_1 = arith.constant 0 : i32
    %c0_i32_2 = arith.constant 0 : i32
    return %arg1, %c0_i32, %c0_i32_0, %c0_i32_1 : i32, i32, i32, i32
  }
  func.func @transform_7(%arg0: i32, %arg1: i32) -> (i32, i32, i32) {
    %c0_i32 = arith.constant 0 : i32
    %c0_i32_0 = arith.constant 0 : i32
    %c0_i32_1 = arith.constant 0 : i32
    return %arg1, %c0_i32, %c0_i32_0 : i32, i32, i32
  }
  func.func @transform_8(%arg0: i32, %arg1: i32) -> (i32, i32, i32, i32) {
    %c0_i32 = arith.constant 0 : i32
    %c0_i32_0 = arith.constant 0 : i32
    %c0_i32_1 = arith.constant 0 : i32
    %c0_i32_2 = arith.constant 0 : i32
    return %arg1, %c0_i32, %c0_i32_0, %c0_i32_1 : i32, i32, i32, i32
  }
  func.func @transform_9(%arg0: i32, %arg1: i32) -> (i32, i32, i32) {
    %c0_i32 = arith.constant 0 : i32
    %c0_i32_0 = arith.constant 0 : i32
    %c0_i32_1 = arith.constant 0 : i32
    return %arg1, %c0_i32, %c0_i32_0 : i32, i32, i32
  }
  func.func @transform_10(%arg0: i32, %arg1: i32) -> (i32, i32, i32) {
    %c0_i32 = arith.constant 0 : i32
    %c0_i32_0 = arith.constant 0 : i32
    %c0_i32_1 = arith.constant 0 : i32
    return %arg1, %c0_i32, %c0_i32_0 : i32, i32, i32
  }
  func.func @transform_11(%arg0: i32, %arg1: i32) -> (i32, i32, i32) {
    %c0_i32 = arith.constant 0 : i32
    %c0_i32_0 = arith.constant 0 : i32
    %c0_i32_1 = arith.constant 0 : i32
    return %arg1, %c0_i32, %c0_i32_0 : i32, i32, i32
  }
  func.func @transform_12(%arg0: i32, %arg1: i32) -> (i32, i32) {
    %c0_i32 = arith.constant 0 : i32
    %c0_i32_0 = arith.constant 0 : i32
    %c0_i32_1 = arith.constant 0 : i32
    return %c0_i32, %c0_i32_0 : i32, i32
  }
  func.func @transform_13(%arg0: i32, %arg1: i32) -> (i32, i32) {
    %c0_i32 = arith.constant 0 : i32
    %c0_i32_0 = arith.constant 0 : i32
    %c0_i32_1 = arith.constant 0 : i32
    return %c0_i32, %c0_i32_0 : i32, i32
  }
  func.func @transform_14(%arg0: i32, %arg1: i32) -> (i32, i32, i32) {
    %c0_i32 = arith.constant 0 : i32
    %c0_i32_0 = arith.constant 0 : i32
    %c0_i32_1 = arith.constant 0 : i32
    return %arg0, %c0_i32, %c0_i32_0 : i32, i32, i32
  }
}

</mosaic_0001>

<llo_original>
// kernel: _lambda_.1
$region0: #{_lambda_.1}
  #allocation0 [shape = 'u32[]', space=smem, size = 0x4, offset = 0x4, fixed_abs, tag = 'smem constant byte address 0x4 - core index']
  #allocation1 [shape = 'u32[144,128]{1,0:T(1,128)}', space=vmem, size = 0x12000, scoped, tag = 'internal scratch']
  #allocation2 [shape = 'f32[5,32]{1,0:T(8,128)}', space=vmem, size = 0x1000, scoped, tag = 'scratch operand']
  #allocation3 [shape = 'f32[1,1]{1,0:T(1,128)S(1)}', space=vmem, size = 0x200, scoped, tag = 'scoped memory for _lambda_.1']
  %s0 = inlined_call_operand.vmem [shape: f32[2,4,588], index: 0, kind: input, shape index: {}]
  %s1 = inlined_call_operand.vmem [shape: bf16[588,32], index: 1, kind: input, shape index: {}]
  %s2 = inlined_call_operand.vmem [shape: f32[5,32], index: 2, kind: input, shape index: {}]
  %s3 = inlined_call_operand.vmem [shape: f32[2,8,32], index: 3, kind: input, shape index: {}]
  %s4 = inlined_call_operand.vmem [shape: bf16[2,2,32,16], index: 4, kind: input, shape index: {}]
  %s5 = inlined_call_operand.vmem [shape: bf16[2,2,32,16], index: 5, kind: input, shape index: {}]
  %s6 = inlined_call_operand.vmem [shape: bf16[2,2,32,16], index: 6, kind: input, shape index: {}]
  %s7 = inlined_call_operand.vmem [shape: f32[2,6,16], index: 7, kind: input, shape index: {}]
  %s8 = inlined_call_operand.vmem [shape: bf16[2,2,16,32], index: 8, kind: input, shape index: {}]
  %s9 = inlined_call_operand.vmem [shape: bf16[2,32,128], index: 9, kind: input, shape index: {}]
  %s10 = inlined_call_operand.vmem [shape: f32[2,1,128], index: 10, kind: input, shape index: {}]
  %s11 = inlined_call_operand.vmem [shape: bf16[2,128,32], index: 11, kind: input, shape index: {}]
  %s12 = inlined_call_operand.vmem [shape: f32[3,32], index: 12, kind: input, shape index: {}]
  %s13 = inlined_call_operand.<no memory space> [shape: f32[1,1], index: 13, kind: input, shape index: {}]
  %s14 = inlined_call_operand.vmem [shape: f32[2,1,1], index: 14, kind: output, shape index: {}]
  %s15 = sld [smem:[#allocation0]]
  $region97: #{_lambda_.1} parent=0
    _
  %s17 = ssub.s32 1, %s15
  %s18 = scalar_select 0, %s17, %s15
  %v19 = vstv %s13
  %20 = vst [vmem:[#allocation3] sm:$0x1] %v19
  loop: start=0, step=1, limit=6
  $region2: #{_lambda_.1} parent=0 // loop_pre_header
    _
  $region3: #{_lambda_.1} parent=0 // loop_header
    %s22 = sphi 0, %s26
    %p23 = scmp.ge.s32.totalorder %s22, 6
    %s29 = sphi 0, %s41
    %s30 = sphi 0, %s37
    %s31 = sphi 0, %s29
    %s32 = sphi 0, %s30
    %s33 = sphi 0, %s31
    %s34 = sphi 0, %s32
    %s44 = sphi 0, %s46
    %s47 = sphi 0, %s44
    %s48 = sphi 0, %s47
    %s64 = sphi 0, %s48
    %s68 = sphi 0, %s68
    %s70 = sphi 0, %s68
    %s71 = sphi 0, %s70
    %s85 = sphi 0, %s71
    %s89 = sphi 0, %s89
    %s91 = sphi 0, %s89
    %s92 = sphi 0, %s91
    %s106 = sphi 0, %s92
    %s112 = sphi 0, %s114
    %s115 = sphi 0, %s112
    %s116 = sphi 0, %s115
    %s132 = sphi 0, %s116
    %s138 = sphi 0, %s140
    %s141 = sphi 0, %s138
    %s142 = sphi 0, %s141
    %s158 = sphi 0, %s142
    %s164 = sphi 0, %s166
    %s167 = sphi 0, %s164
    %s168 = sphi 0, %s167
    %s184 = sphi 0, %s168
    %s190 = sphi 0, %s192
    %s193 = sphi 0, %s190
    %s194 = sphi 0, %s193
    %s210 = sphi 0, %s194
    %s216 = sphi 0, %s218
    %s219 = sphi 0, %s216
    %s220 = sphi 0, %s219
    %s236 = sphi 0, %s220
    %s242 = sphi 0, %s244
    %s245 = sphi 0, %s242
    %s246 = sphi 0, %s245
    %s262 = sphi 0, %s246
    %s268 = sphi 0, %s270
    %s271 = sphi 0, %s268
    %s272 = sphi 0, %s271
    %s288 = sphi 0, %s272
    %s294 = sphi 0, %s296
    %s297 = sphi 0, %s294
    %s298 = sphi 0, %s297
    %s314 = sphi 0, %s298
    %s320 = sphi 0, %s322
    %s323 = sphi 0, %s320
    %s324 = sphi 0, %s323
    %s340 = sphi 0, %s324
    %s344 = sphi 0, %s344
    %s346 = sphi 0, %s344
    %s347 = sphi 0, %s346
    %s361 = sphi 0, %s347
    %s365 = sphi 0, %s365
    %s367 = sphi 0, %s365
    %s368 = sphi 0, %s367
    %s382 = sphi 0, %s368
    %s388 = sphi 0, %s390
    %s391 = sphi 0, %s388
    %s392 = sphi 0, %s391
    %s408 = sphi 0, %s392
  $region4: #{_lambda_.1} parent=0 // loop_header_branch
    %25 = sbr.rel (%p23) target = $region8
  $region5: #{_lambda_.1} parent=0 // loop_body
    %s27 = ssub.s32 %s22, 1
    %s28 = ssub.s32 %s22, 2
    %s35 = sadd.s32 1, %s30
    %p36 = scmp.ge.s32.totalorder %s35, 2
    %s37 = scalar_select %p36, 0, %s35
    %s38 = sadd.s32 1, %s29
    %s39 = scalar_select %p36, %s38, %s29
    %p40 = scmp.ge.s32.totalorder %s39, 2
    %s41 = scalar_select %p40, 0, %s39
    %s42 = ssub.s32 %s29, %s41
    %p43 = scmp.eq.s32.totalorder %s42, 0
    %s45 = sadd.s32 %s44, 1
    %s46 = scalar_select %p43, %s44, %s45
    %p49 = pneg %p43
    %p50 = scmp.eq.s32.totalorder %s22, 3
    %p51 = por %p49, %p50
    %p52 = scmp.ne.s32.totalorder %s44, %s47
    %p53 = scmp.eq.s32.totalorder %s22, 0
    %p54 = por %p52, %p53
    %p55 = scmp.ne.s32.totalorder %s44, %s47
    %p56 = scmp.eq.s32.totalorder %s27, 3
    %p57 = por %p55, %p56
    %p58 = scmp.ne.s32.totalorder %s47, %s48
    %p59 = scmp.eq.s32.totalorder %s27, 0
    %p60 = por %p58, %p59
    %p61 = scmp.ne.s32.totalorder %s47, %s48
    %p62 = scmp.eq.s32.totalorder %s28, 3
    %p63 = por %p61, %p62
    %p65 = scmp.ne.s32.totalorder %s48, %s64
    %p66 = scmp.eq.s32.totalorder %s28, 0
    %p67 = por %p65, %p66
    %s69 = sadd.s32 %s68, 1
    %p72 = scmp.eq.s32.totalorder %s22, 3
    %p73 = scmp.ne.s32.totalorder %s68, %s70
    %p74 = scmp.eq.s32.totalorder %s22, 0
    %p75 = por %p73, %p74
    %p76 = scmp.ne.s32.totalorder %s68, %s70
    %p77 = scmp.eq.s32.totalorder %s27, 3
    %p78 = por %p76, %p77
    %p79 = scmp.ne.s32.totalorder %s70, %s71
    %p80 = scmp.eq.s32.totalorder %s27, 0
    %p81 = por %p79, %p80
    %p82 = scmp.ne.s32.totalorder %s70, %s71
    %p83 = scmp.eq.s32.totalorder %s28, 3
    %p84 = por %p82, %p83
    %p86 = scmp.ne.s32.totalorder %s71, %s85
    %p87 = scmp.eq.s32.totalorder %s28, 0
    %p88 = por %p86, %p87
    %s90 = sadd.s32 %s89, 1
    %p93 = scmp.eq.s32.totalorder %s22, 3
    %p94 = scmp.ne.s32.totalorder %s89, %s91
    %p95 = scmp.eq.s32.totalorder %s22, 0
    %p96 = por %p94, %p95
    %p97 = scmp.ne.s32.totalorder %s89, %s91
    %p98 = scmp.eq.s32.totalorder %s27, 3
    %p99 = por %p97, %p98
    %p100 = scmp.ne.s32.totalorder %s91, %s92
    %p101 = scmp.eq.s32.totalorder %s27, 0
    %p102 = por %p100, %p101
    %p103 = scmp.ne.s32.totalorder %s91, %s92
    %p104 = scmp.eq.s32.totalorder %s28, 3
    %p105 = por %p103, %p104
    %p107 = scmp.ne.s32.totalorder %s92, %s106
    %p108 = scmp.eq.s32.totalorder %s28, 0
    %p109 = por %p107, %p108
    %s110 = ssub.s32 %s30, %s37
    %p111 = scmp.eq.s32.totalorder %s110, 0
    %s113 = sadd.s32 %s112, 1
    %s114 = scalar_select %p111, %s112, %s113
    %p117 = pneg %p111
    %p118 = scmp.eq.s32.totalorder %s22, 3
    %p119 = por %p117, %p118
    %p120 = scmp.ne.s32.totalorder %s112, %s115
    %p121 = scmp.eq.s32.totalorder %s22, 0
    %p122 = por %p120, %p121
    %p123 = scmp.ne.s32.totalorder %s112, %s115
    %p124 = scmp.eq.s32.totalorder %s27, 3
    %p125 = por %p123, %p124
    %p126 = scmp.ne.s32.totalorder %s115, %s116
    %p127 = scmp.eq.s32.totalorder %s27, 0
    %p128 = por %p126, %p127
    %p129 = scmp.ne.s32.totalorder %s115, %s116
    %p130 = scmp.eq.s32.totalorder %s28, 3
    %p131 = por %p129, %p130
    %p133 = scmp.ne.s32.totalorder %s116, %s132
    %p134 = scmp.eq.s32.totalorder %s28, 0
    %p135 = por %p133, %p134
    %s136 = ssub.s32 %s30, %s37
    %p137 = scmp.eq.s32.totalorder %s136, 0
    %s139 = sadd.s32 %s138, 1
    %s140 = scalar_select %p137, %s138, %s139
    %p143 = pneg %p137
    %p144 = scmp.eq.s32.totalorder %s22, 3
    %p145 = por %p143, %p144
    %p146 = scmp.ne.s32.totalorder %s138, %s141
    %p147 = scmp.eq.s32.totalorder %s22, 0
    %p148 = por %p146, %p147
    %p149 = scmp.ne.s32.totalorder %s138, %s141
    %p150 = scmp.eq.s32.totalorder %s27, 3
    %p151 = por %p149, %p150
    %p152 = scmp.ne.s32.totalorder %s141, %s142
    %p153 = scmp.eq.s32.totalorder %s27, 0
    %p154 = por %p152, %p153
    %p155 = scmp.ne.s32.totalorder %s141, %s142
    %p156 = scmp.eq.s32.totalorder %s28, 3
    %p157 = por %p155, %p156
    %p159 = scmp.ne.s32.totalorder %s142, %s158
    %p160 = scmp.eq.s32.totalorder %s28, 0
    %p161 = por %p159, %p160
    %s162 = ssub.s32 %s30, %s37
    %p163 = scmp.eq.s32.totalorder %s162, 0
    %s165 = sadd.s32 %s164, 1
    %s166 = scalar_select %p163, %s164, %s165
    %p169 = pneg %p163
    %p170 = scmp.eq.s32.totalorder %s22, 3
    %p171 = por %p169, %p170
    %p172 = scmp.ne.s32.totalorder %s164, %s167
    %p173 = scmp.eq.s32.totalorder %s22, 0
    %p174 = por %p172, %p173
    %p175 = scmp.ne.s32.totalorder %s164, %s167
    %p176 = scmp.eq.s32.totalorder %s27, 3
    %p177 = por %p175, %p176
    %p178 = scmp.ne.s32.totalorder %s167, %s168
    %p179 = scmp.eq.s32.totalorder %s27, 0
    %p180 = por %p178, %p179
    %p181 = scmp.ne.s32.totalorder %s167, %s168
    %p182 = scmp.eq.s32.totalorder %s28, 3
    %p183 = por %p181, %p182
    %p185 = scmp.ne.s32.totalorder %s168, %s184
    %p186 = scmp.eq.s32.totalorder %s28, 0
    %p187 = por %p185, %p186
    %s188 = ssub.s32 %s30, %s37
    %p189 = scmp.eq.s32.totalorder %s188, 0
    %s191 = sadd.s32 %s190, 1
    %s192 = scalar_select %p189, %s190, %s191
    %p195 = pneg %p189
    %p196 = scmp.eq.s32.totalorder %s22, 3
    %p197 = por %p195, %p196
    %p198 = scmp.ne.s32.totalorder %s190, %s193
    %p199 = scmp.eq.s32.totalorder %s22, 0
    %p200 = por %p198, %p199
    %p201 = scmp.ne.s32.totalorder %s190, %s193
    %p202 = scmp.eq.s32.totalorder %s27, 3
    %p203 = por %p201, %p202
    %p204 = scmp.ne.s32.totalorder %s193, %s194
    %p205 = scmp.eq.s32.totalorder %s27, 0
    %p206 = por %p204, %p205
    %p207 = scmp.ne.s32.totalorder %s193, %s194
    %p208 = scmp.eq.s32.totalorder %s28, 3
    %p209 = por %p207, %p208
    %p211 = scmp.ne.s32.totalorder %s194, %s210
    %p212 = scmp.eq.s32.totalorder %s28, 0
    %p213 = por %p211, %p212
    %s214 = ssub.s32 %s30, %s37
    %p215 = scmp.eq.s32.totalorder %s214, 0
    %s217 = sadd.s32 %s216, 1
    %s218 = scalar_select %p215, %s216, %s217
    %p221 = pneg %p215
    %p222 = scmp.eq.s32.totalorder %s22, 3
    %p223 = por %p221, %p222
    %p224 = scmp.ne.s32.totalorder %s216, %s219
    %p225 = scmp.eq.s32.totalorder %s22, 0
    %p226 = por %p224, %p225
    %p227 = scmp.ne.s32.totalorder %s216, %s219
    %p228 = scmp.eq.s32.totalorder %s27, 3
    %p229 = por %p227, %p228
    %p230 = scmp.ne.s32.totalorder %s219, %s220
    %p231 = scmp.eq.s32.totalorder %s27, 0
    %p232 = por %p230, %p231
    %p233 = scmp.ne.s32.totalorder %s219, %s220
    %p234 = scmp.eq.s32.totalorder %s28, 3
    %p235 = por %p233, %p234
    %p237 = scmp.ne.s32.totalorder %s220, %s236
    %p238 = scmp.eq.s32.totalorder %s28, 0
    %p239 = por %p237, %p238
    %s240 = ssub.s32 %s30, %s37
    %p241 = scmp.eq.s32.totalorder %s240, 0
    %s243 = sadd.s32 %s242, 1
    %s244 = scalar_select %p241, %s242, %s243
    %p247 = pneg %p241
    %p248 = scmp.eq.s32.totalorder %s22, 3
    %p249 = por %p247, %p248
    %p250 = scmp.ne.s32.totalorder %s242, %s245
    %p251 = scmp.eq.s32.totalorder %s22, 0
    %p252 = por %p250, %p251
    %p253 = scmp.ne.s32.totalorder %s242, %s245
    %p254 = scmp.eq.s32.totalorder %s27, 3
    %p255 = por %p253, %p254
    %p256 = scmp.ne.s32.totalorder %s245, %s246
    %p257 = scmp.eq.s32.totalorder %s27, 0
    %p258 = por %p256, %p257
    %p259 = scmp.ne.s32.totalorder %s245, %s246
    %p260 = scmp.eq.s32.totalorder %s28, 3
    %p261 = por %p259, %p260
    %p263 = scmp.ne.s32.totalorder %s246, %s262
    %p264 = scmp.eq.s32.totalorder %s28, 0
    %p265 = por %p263, %p264
    %s266 = ssub.s32 %s30, %s37
    %p267 = scmp.eq.s32.totalorder %s266, 0
    %s269 = sadd.s32 %s268, 1
    %s270 = scalar_select %p267, %s268, %s269
    %p273 = pneg %p267
    %p274 = scmp.eq.s32.totalorder %s22, 3
    %p275 = por %p273, %p274
    %p276 = scmp.ne.s32.totalorder %s268, %s271
    %p277 = scmp.eq.s32.totalorder %s22, 0
    %p278 = por %p276, %p277
    %p279 = scmp.ne.s32.totalorder %s268, %s271
    %p280 = scmp.eq.s32.totalorder %s27, 3
    %p281 = por %p279, %p280
    %p282 = scmp.ne.s32.totalorder %s271, %s272
    %p283 = scmp.eq.s32.totalorder %s27, 0
    %p284 = por %p282, %p283
    %p285 = scmp.ne.s32.totalorder %s271, %s272
    %p286 = scmp.eq.s32.totalorder %s28, 3
    %p287 = por %p285, %p286
    %p289 = scmp.ne.s32.totalorder %s272, %s288
    %p290 = scmp.eq.s32.totalorder %s28, 0
    %p291 = por %p289, %p290
    %s292 = ssub.s32 %s30, %s37
    %p293 = scmp.eq.s32.totalorder %s292, 0
    %s295 = sadd.s32 %s294, 1
    %s296 = scalar_select %p293, %s294, %s295
    %p299 = pneg %p293
    %p300 = scmp.eq.s32.totalorder %s22, 3
    %p301 = por %p299, %p300
    %p302 = scmp.ne.s32.totalorder %s294, %s297
    %p303 = scmp.eq.s32.totalorder %s22, 0
    %p304 = por %p302, %p303
    %p305 = scmp.ne.s32.totalorder %s294, %s297
    %p306 = scmp.eq.s32.totalorder %s27, 3
    %p307 = por %p305, %p306
    %p308 = scmp.ne.s32.totalorder %s297, %s298
    %p309 = scmp.eq.s32.totalorder %s27, 0
    %p310 = por %p308, %p309
    %p311 = scmp.ne.s32.totalorder %s297, %s298
    %p312 = scmp.eq.s32.totalorder %s28, 3
    %p313 = por %p311, %p312
    %p315 = scmp.ne.s32.totalorder %s298, %s314
    %p316 = scmp.eq.s32.totalorder %s28, 0
    %p317 = por %p315, %p316
    %s318 = ssub.s32 %s30, %s37
    %p319 = scmp.eq.s32.totalorder %s318, 0
    %s321 = sadd.s32 %s320, 1
    %s322 = scalar_select %p319, %s320, %s321
    %p325 = pneg %p319
    %p326 = scmp.eq.s32.totalorder %s22, 3
    %p327 = por %p325, %p326
    %p328 = scmp.ne.s32.totalorder %s320, %s323
    %p329 = scmp.eq.s32.totalorder %s22, 0
    %p330 = por %p328, %p329
    %p331 = scmp.ne.s32.totalorder %s320, %s323
    %p332 = scmp.eq.s32.totalorder %s27, 3
    %p333 = por %p331, %p332
    %p334 = scmp.ne.s32.totalorder %s323, %s324
    %p335 = scmp.eq.s32.totalorder %s27, 0
    %p336 = por %p334, %p335
    %p337 = scmp.ne.s32.totalorder %s323, %s324
    %p338 = scmp.eq.s32.totalorder %s28, 3
    %p339 = por %p337, %p338
    %p341 = scmp.ne.s32.totalorder %s324, %s340
    %p342 = scmp.eq.s32.totalorder %s28, 0
    %p343 = por %p341, %p342
    %s345 = sadd.s32 %s344, 1
    %p348 = scmp.eq.s32.totalorder %s22, 3
    %p349 = scmp.ne.s32.totalorder %s344, %s346
    %p350 = scmp.eq.s32.totalorder %s22, 0
    %p351 = por %p349, %p350
    %p352 = scmp.ne.s32.totalorder %s344, %s346
    %p353 = scmp.eq.s32.totalorder %s27, 3
    %p354 = por %p352, %p353
    %p355 = scmp.ne.s32.totalorder %s346, %s347
    %p356 = scmp.eq.s32.totalorder %s27, 0
    %p357 = por %p355, %p356
    %p358 = scmp.ne.s32.totalorder %s346, %s347
    %p359 = scmp.eq.s32.totalorder %s28, 3
    %p360 = por %p358, %p359
    %p362 = scmp.ne.s32.totalorder %s347, %s361
    %p363 = scmp.eq.s32.totalorder %s28, 0
    %p364 = por %p362, %p363
    %s366 = sadd.s32 %s365, 1
    %p369 = scmp.eq.s32.totalorder %s22, 3
    %p370 = scmp.ne.s32.totalorder %s365, %s367
    %p371 = scmp.eq.s32.totalorder %s22, 0
    %p372 = por %p370, %p371
    %p373 = scmp.ne.s32.totalorder %s365, %s367
    %p374 = scmp.eq.s32.totalorder %s27, 3
    %p375 = por %p373, %p374
    %p376 = scmp.ne.s32.totalorder %s367, %s368
    %p377 = scmp.eq.s32.totalorder %s27, 0
    %p378 = por %p376, %p377
    %p379 = scmp.ne.s32.totalorder %s367, %s368
    %p380 = scmp.eq.s32.totalorder %s28, 3
    %p381 = por %p379, %p380
    %p383 = scmp.ne.s32.totalorder %s368, %s382
    %p384 = scmp.eq.s32.totalorder %s28, 0
    %p385 = por %p383, %p384
    %s386 = ssub.s32 %s29, %s41
    %p387 = scmp.eq.s32.totalorder %s386, 0
    %s389 = sadd.s32 %s388, 1
    %s390 = scalar_select %p387, %s388, %s389
    %p393 = pneg %p387
    %p394 = scmp.eq.s32.totalorder %s22, 3
    %p395 = por %p393, %p394
    %p396 = scmp.ne.s32.totalorder %s388, %s391
    %p397 = scmp.eq.s32.totalorder %s22, 0
    %p398 = por %p396, %p397
    %p399 = scmp.ne.s32.totalorder %s388, %s391
    %p400 = scmp.eq.s32.totalorder %s27, 3
    %p401 = por %p399, %p400
    %p402 = scmp.ne.s32.totalorder %s391, %s392
    %p403 = scmp.eq.s32.totalorder %s27, 0
    %p404 = por %p402, %p403
    %p405 = scmp.ne.s32.totalorder %s391, %s392
    %p406 = scmp.eq.s32.totalorder %s28, 3
    %p407 = por %p405, %p406
    %p409 = scmp.ne.s32.totalorder %s392, %s408
    %p410 = scmp.eq.s32.totalorder %s28, 0
    %p411 = por %p409, %p410
    %p412 = scmp.le.s32.totalorder 1, %s22
    %p413 = scmp.lt.s32.totalorder %s22, 5
    %p414 = pnand %p412, %p413
    %p415 = pneg %p414
    // Predicated region
    $region9: #{_lambda_.1} parent=5 // pred_check
      _
    $region10: #{_lambda_.1} parent=5 // pred_check_branch
      %417 = sbr.rel (%p414) target = $region12
    $region11: #{_lambda_.1} parent=5 // pred_region
      %s418 = ssub.s32 %s22, 1
      // Predicated region
      $region13: #{_lambda_.1} parent=11 // pred_check
        %p419 = pneg %p81
      $region14: #{_lambda_.1} parent=11 // pred_check_branch
        %421 = sbr.rel (%p419) target = $region16
      $region15: #{_lambda_.1} parent=11 // pred_region
        _
      $region16: #{_lambda_.1} parent=11 // pred_fallthru
        _
      // Predicated region
      $region17: #{_lambda_.1} parent=11 // pred_check
        %p422 = pneg %p102
      $region18: #{_lambda_.1} parent=11 // pred_check_branch
        %424 = sbr.rel (%p422) target = $region20
      $region19: #{_lambda_.1} parent=11 // pred_region
        _
      $region20: #{_lambda_.1} parent=11 // pred_fallthru
        _
      // Predicated region
      $region21: #{_lambda_.1} parent=11 // pred_check
        %p425 = pneg %p357
      $region22: #{_lambda_.1} parent=11 // pred_check_branch
        %427 = sbr.rel (%p425) target = $region24
      $region23: #{_lambda_.1} parent=11 // pred_region
        _
      $region24: #{_lambda_.1} parent=11 // pred_fallthru
        _
      // Predicated region
      $region25: #{_lambda_.1} parent=11 // pred_check
        %p428 = pneg %p378
      $region26: #{_lambda_.1} parent=11 // pred_check_branch
        %430 = sbr.rel (%p428) target = $region28
      $region27: #{_lambda_.1} parent=11 // pred_region
        _
      $region28: #{_lambda_.1} parent=11 // pred_fallthru
        _
    $region12: #{_lambda_.1} parent=5 // pred_fallthru
      _
    %p431 = scmp.lt.s32.totalorder %s22, 4
    // Predicated region
    $region29: #{_lambda_.1} parent=5 // pred_check
      %p432 = pneg %p431
    $region30: #{_lambda_.1} parent=5 // pred_check_branch
      %434 = sbr.rel (%p432) target = $region32
    $region31: #{_lambda_.1} parent=5 // pred_region
      // Predicated region
      $region33: #{_lambda_.1} parent=31 // pred_check
        %p435 = pneg %p54
      $region34: #{_lambda_.1} parent=31 // pred_check_branch
        %437 = sbr.rel (%p435) target = $region36
      $region35: #{_lambda_.1} parent=31 // pred_region
        %p438 = scmp.lt.s32.totalorder %s29, 1
        %s439 = scalar_select %p438, %s29, 1
        %s440 = smul.addr %s439, 5
        %s441 = smul.addr %s440, 4
        %s442 = scalar_lea.vmem %s0, %s441
      $region36: #{_lambda_.1} parent=31 // pred_fallthru
        _
      // Predicated region
      $region37: #{_lambda_.1} parent=31 // pred_check
        %p443 = pneg %p122
      $region38: #{_lambda_.1} parent=31 // pred_check_branch
        %445 = sbr.rel (%p443) target = $region40
      $region39: #{_lambda_.1} parent=31 // pred_region
        %p446 = scmp.lt.s32.totalorder %s30, 1
        %s447 = scalar_select %p446, %s30, 1
        %s448 = smul.addr %s447, 8
        %s449 = scalar_lea.vmem %s3, %s448
      $region40: #{_lambda_.1} parent=31 // pred_fallthru
        _
      // Predicated region
      $region41: #{_lambda_.1} parent=31 // pred_check
        %p450 = pneg %p148
      $region42: #{_lambda_.1} parent=31 // pred_check_branch
        %452 = sbr.rel (%p450) target = $region44
      $region43: #{_lambda_.1} parent=31 // pred_region
        %p453 = scmp.lt.s32.totalorder %s30, 1
        %s454 = scalar_select %p453, %s30, 1
        %s455 = smul.addr %s454, 8
        %s456 = smul.addr %s455, 4
        %s457 = scalar_lea.vmem %s4, %s456
      $region44: #{_lambda_.1} parent=31 // pred_fallthru
        _
      // Predicated region
      $region45: #{_lambda_.1} parent=31 // pred_check
        %p458 = pneg %p174
      $region46: #{_lambda_.1} parent=31 // pred_check_branch
        %460 = sbr.rel (%p458) target = $region48
      $region47: #{_lambda_.1} parent=31 // pred_region
        %p461 = scmp.lt.s32.totalorder %s30, 1
        %s462 = scalar_select %p461, %s30, 1
        %s463 = smul.addr %s462, 8
        %s464 = smul.addr %s463, 4
        %s465 = scalar_lea.vmem %s5, %s464
      $region48: #{_lambda_.1} parent=31 // pred_fallthru
        _
      // Predicated region
      $region49: #{_lambda_.1} parent=31 // pred_check
        %p466 = pneg %p200
      $region50: #{_lambda_.1} parent=31 // pred_check_branch
        %468 = sbr.rel (%p466) target = $region52
      $region51: #{_lambda_.1} parent=31 // pred_region
        %p469 = scmp.lt.s32.totalorder %s30, 1
        %s470 = scalar_select %p469, %s30, 1
        %s471 = smul.addr %s470, 8
        %s472 = smul.addr %s471, 4
        %s473 = scalar_lea.vmem %s6, %s472
      $region52: #{_lambda_.1} parent=31 // pred_fallthru
        _
      // Predicated region
      $region53: #{_lambda_.1} parent=31 // pred_check
        %p474 = pneg %p226
      $region54: #{_lambda_.1} parent=31 // pred_check_branch
        %476 = sbr.rel (%p474) target = $region56
      $region55: #{_lambda_.1} parent=31 // pred_region
        %p477 = scmp.lt.s32.totalorder %s30, 1
        %s478 = scalar_select %p477, %s30, 1
        %s479 = smul.addr %s478, 8
        %s480 = scalar_lea.vmem %s7, %s479
      $region56: #{_lambda_.1} parent=31 // pred_fallthru
        _
      // Predicated region
      $region57: #{_lambda_.1} parent=31 // pred_check
        %p481 = pneg %p252
      $region58: #{_lambda_.1} parent=31 // pred_check_branch
        %483 = sbr.rel (%p481) target = $region60
      $region59: #{_lambda_.1} parent=31 // pred_region
        %p484 = scmp.lt.s32.totalorder %s30, 1
        %s485 = scalar_select %p484, %s30, 1
        %s486 = smul.addr %s485, 4
        %s487 = smul.addr %s486, 4
        %s488 = scalar_lea.vmem %s8, %s487
      $region60: #{_lambda_.1} parent=31 // pred_fallthru
        _
      // Predicated region
      $region61: #{_lambda_.1} parent=31 // pred_check
        %p489 = pneg %p278
      $region62: #{_lambda_.1} parent=31 // pred_check_branch
        %491 = sbr.rel (%p489) target = $region64
      $region63: #{_lambda_.1} parent=31 // pred_region
        %p492 = scmp.lt.s32.totalorder %s30, 1
        %s493 = scalar_select %p492, %s30, 1
        %s494 = smul.addr %s493, 4
        %s495 = smul.addr %s494, 4
        %s496 = scalar_lea.vmem %s9, %s495
      $region64: #{_lambda_.1} parent=31 // pred_fallthru
        _
      // Predicated region
      $region65: #{_lambda_.1} parent=31 // pred_check
        %p497 = pneg %p304
      $region66: #{_lambda_.1} parent=31 // pred_check_branch
        %499 = sbr.rel (%p497) target = $region68
      $region67: #{_lambda_.1} parent=31 // pred_region
        %p500 = scmp.lt.s32.totalorder %s30, 1
        %s501 = scalar_select %p500, %s30, 1
        %s502 = scalar_lea.vmem %s10, %s501
      $region68: #{_lambda_.1} parent=31 // pred_fallthru
        _
      // Predicated region
      $region69: #{_lambda_.1} parent=31 // pred_check
        %p503 = pneg %p330
      $region70: #{_lambda_.1} parent=31 // pred_check_branch
        %505 = sbr.rel (%p503) target = $region72
      $region71: #{_lambda_.1} parent=31 // pred_region
        %p506 = scmp.lt.s32.totalorder %s30, 1
        %s507 = scalar_select %p506, %s30, 1
        %s508 = smul.addr %s507, 16
        %s509 = smul.addr %s508, 4
        %s510 = scalar_lea.vmem %s11, %s509
      $region72: #{_lambda_.1} parent=31 // pred_fallthru
        _
    $region32: #{_lambda_.1} parent=5 // pred_fallthru
      _
    %p511 = scmp.le.s32.totalorder 1, %s22
    %p512 = scmp.lt.s32.totalorder %s22, 5
    %p513 = pnand %p511, %p512
    %p514 = pneg %p513
    // Predicated region
    $region73: #{_lambda_.1} parent=5 // pred_check
      _
    $region74: #{_lambda_.1} parent=5 // pred_check_branch
      %516 = sbr.rel (%p513) target = $region76
    $region75: #{_lambda_.1} parent=5 // pred_region
      %s517 = ssub.s32 %s22, 1
      %p518 = scmp.lt.s32.totalorder %s31, 1
      %s519 = scalar_select %p518, %s31, 1
      %s520 = smul.addr %s519, 5
      %s521 = smul.addr %s520, 4
      %s522 = scalar_lea.vmem %s0, %s521
      %p523 = pneg %p60
      %p524 = pneg %p57
      %p525 = pneg %p81
      %p526 = pneg %p78
      %p527 = pneg %p102
      %p528 = pneg %p99
      %p529 = scmp.lt.s32.totalorder %s32, 1
      %s530 = scalar_select %p529, %s32, 1
      %s531 = smul.addr %s530, 8
      %s532 = scalar_lea.vmem %s3, %s531
      %p533 = pneg %p128
      %p534 = pneg %p125
      %p535 = scmp.lt.s32.totalorder %s32, 1
      %s536 = scalar_select %p535, %s32, 1
      %s537 = smul.addr %s536, 8
      %s538 = smul.addr %s537, 4
      %s539 = scalar_lea.vmem %s4, %s538
      %p540 = pneg %p154
      %p541 = pneg %p151
      %p542 = scmp.lt.s32.totalorder %s32, 1
      %s543 = scalar_select %p542, %s32, 1
      %s544 = smul.addr %s543, 8
      %s545 = smul.addr %s544, 4
      %s546 = scalar_lea.vmem %s5, %s545
      %p547 = pneg %p180
      %p548 = pneg %p177
      %p549 = scmp.lt.s32.totalorder %s32, 1
      %s550 = scalar_select %p549, %s32, 1
      %s551 = smul.addr %s550, 8
      %s552 = smul.addr %s551, 4
      %s553 = scalar_lea.vmem %s6, %s552
      %p554 = pneg %p206
      %p555 = pneg %p203
      %p556 = scmp.lt.s32.totalorder %s32, 1
      %s557 = scalar_select %p556, %s32, 1
      %s558 = smul.addr %s557, 8
      %s559 = scalar_lea.vmem %s7, %s558
      %p560 = pneg %p232
      %p561 = pneg %p229
      %p562 = scmp.lt.s32.totalorder %s32, 1
      %s563 = scalar_select %p562, %s32, 1
      %s564 = smul.addr %s563, 4
      %s565 = smul.addr %s564, 4
      %s566 = scalar_lea.vmem %s8, %s565
      %p567 = pneg %p258
      %p568 = pneg %p255
      %p569 = scmp.lt.s32.totalorder %s32, 1
      %s570 = scalar_select %p569, %s32, 1
      %s571 = smul.addr %s570, 4
      %s572 = smul.addr %s571, 4
      %s573 = scalar_lea.vmem %s9, %s572
      %p574 = pneg %p284
      %p575 = pneg %p281
      %p576 = scmp.lt.s32.totalorder %s32, 1
      %s577 = scalar_select %p576, %s32, 1
      %s578 = scalar_lea.vmem %s10, %s577
      %p579 = pneg %p310
      %p580 = pneg %p307
      %p581 = scmp.lt.s32.totalorder %s32, 1
      %s582 = scalar_select %p581, %s32, 1
      %s583 = smul.addr %s582, 16
      %s584 = smul.addr %s583, 4
      %s585 = scalar_lea.vmem %s11, %s584
      %p586 = pneg %p336
      %p587 = pneg %p333
      %p588 = pneg %p357
      %p589 = pneg %p354
      %p590 = pneg %p378
      %p591 = pneg %p375
      %p592 = pneg %p404
      %p593 = pneg %p401
      %p594 = scmp.lt.s32.totalorder %s31, 1
      %s595 = scalar_select %p594, %s31, 1
      %s596 = scalar_lea.vmem %s14, %s595
      %p597 = scmp.lt.s32.totalorder %s31, 1
      %s598 = scalar_select %p597, %s31, 1
      %s599 = smul.addr %s598, 5
      %s600 = smul.addr %s599, 4
      %s601 = scalar_lea.vmem %s0, %s600
      %p602 = scmp.lt.s32.totalorder %s32, 1
      %s603 = scalar_select %p602, %s32, 1
      %s604 = smul.addr %s603, 8
      %s605 = scalar_lea.vmem %s3, %s604
      %p606 = scmp.lt.s32.totalorder %s32, 1
      %s607 = scalar_select %p606, %s32, 1
      %s608 = smul.addr %s607, 8
      %s609 = smul.addr %s608, 4
      %s610 = scalar_lea.vmem %s4, %s609
      %p611 = scmp.lt.s32.totalorder %s32, 1
      %s612 = scalar_select %p611, %s32, 1
      %s613 = smul.addr %s612, 8
      %s614 = smul.addr %s613, 4
      %s615 = scalar_lea.vmem %s5, %s614
      %p616 = scmp.lt.s32.totalorder %s32, 1
      %s617 = scalar_select %p616, %s32, 1
      %s618 = smul.addr %s617, 8
      %s619 = smul.addr %s618, 4
      %s620 = scalar_lea.vmem %s6, %s619
      %p621 = scmp.lt.s32.totalorder %s32, 1
      %s622 = scalar_select %p621, %s32, 1
      %s623 = smul.addr %s622, 8
      %s624 = scalar_lea.vmem %s7, %s623
      %p625 = scmp.lt.s32.totalorder %s32, 1
      %s626 = scalar_select %p625, %s32, 1
      %s627 = smul.addr %s626, 4
      %s628 = smul.addr %s627, 4
      %s629 = scalar_lea.vmem %s8, %s628
      %p630 = scmp.lt.s32.totalorder %s32, 1
      %s631 = scalar_select %p630, %s32, 1
      %s632 = smul.addr %s631, 4
      %s633 = smul.addr %s632, 4
      %s634 = scalar_lea.vmem %s9, %s633
      %p635 = scmp.lt.s32.totalorder %s32, 1
      %s636 = scalar_select %p635, %s32, 1
      %s637 = scalar_lea.vmem %s10, %s636
      %p638 = scmp.lt.s32.totalorder %s32, 1
      %s639 = scalar_select %p638, %s32, 1
      %s640 = smul.addr %s639, 16
      %s641 = smul.addr %s640, 4
      %s642 = scalar_lea.vmem %s11, %s641
      %p643 = scmp.lt.s32.totalorder %s31, 1
      %s644 = scalar_select %p643, %s31, 1
      %s645 = scalar_lea.vmem %s14, %s644
      %p647 = scmp.eq.s32.totalorder %s32, 0
      // Predicated region
      $region77: #{_lambda_.1} parent=75 // pred_check
        %p648 = pneg %p647
      $region78: #{_lambda_.1} parent=75 // pred_check_branch
        %650 = sbr.rel (%p648) target = $region80
      $region79: #{_lambda_.1} parent=75 // pred_region
        %v651 = vld [vmem:[%s601] sm:$0xff]
        %v652 = vld [vmem:[%s601 + $0x8] sm:$0xff]
        %v653 = vld [vmem:[%s601 + $0x10] sm:$0xf]
        %v656 = vcombine.high %v651, %v651
        %v657 = vcombine.high %v652, %v652
        %v660 = vpack.c.bf16 %v651, %v651
        %v661 = vpack.c.bf16 %v656, %v656
        %v662 = vpack.c.bf16 %v652, %v652
        %v663 = vpack.c.bf16 %v657, %v657
        %v664 = vpack.c.bf16 %v653, %v653
        %v665 = vld [vmem:[%s1] sm:$0xf]
        %v666 = vld [vmem:[%s1 + $0x4] sm:$0xf]
        %v667 = vld [vmem:[%s1 + $0x8] sm:$0xf]
        %v668 = vld [vmem:[%s1 + $0xc] sm:$0xf]
        %v669 = vld [vmem:[%s1 + $0x10] sm:$0xf]
        %v670 = vld [vmem:[%s1 + $0x14] sm:$0xf]
        %v671 = vld [vmem:[%s1 + $0x18] sm:$0xf]
        %v672 = vld [vmem:[%s1 + $0x1c] sm:$0xf]
        %v673 = vld [vmem:[%s1 + $0x20] sm:$0xf]
        %v674 = vld [vmem:[%s1 + $0x24] sm:$0xf]
        %v675 = vld [vmem:[%s1 + $0x28] sm:$0xf]
        %v676 = vld [vmem:[%s1 + $0x2c] sm:$0xf]
        %v677 = vld [vmem:[%s1 + $0x30] sm:$0xf]
        %v678 = vld [vmem:[%s1 + $0x34] sm:$0xf]
        %v679 = vld [vmem:[%s1 + $0x38] sm:$0xf]
        %v680 = vld [vmem:[%s1 + $0x3c] sm:$0xf]
        %v681 = vld [vmem:[%s1 + $0x40] sm:$0xf]
        %v682 = vld [vmem:[%s1 + $0x44] sm:$0xf]
        %v683 = vld [vmem:[%s1 + $0x48] sm:$0xf]
        %v684 = vld [vmem:[%s1 + $0x4c] sm:$0xf]
        %v685 = vld [vmem:[%s1 + $0x50] sm:$0xf]
        %v686 = vld [vmem:[%s1 + $0x54] sm:$0xf]
        %v687 = vld [vmem:[%s1 + $0x58] sm:$0xf]
        %v688 = vld [vmem:[%s1 + $0x5c] sm:$0xf]
        %v689 = vld [vmem:[%s1 + $0x60] sm:$0xf]
        %v690 = vld [vmem:[%s1 + $0x64] sm:$0xf]
        %v691 = vld [vmem:[%s1 + $0x68] sm:$0xf]
        %v692 = vld [vmem:[%s1 + $0x6c] sm:$0xf]
        %v693 = vld [vmem:[%s1 + $0x70] sm:$0xf]
        %v694 = vld [vmem:[%s1 + $0x74] sm:$0xf]
        %v695 = vld [vmem:[%s1 + $0x78] sm:$0xf]
        %v696 = vld [vmem:[%s1 + $0x7c] sm:$0xf]
        %v697 = vld [vmem:[%s1 + $0x80] sm:$0xf]
        %v698 = vld [vmem:[%s1 + $0x84] sm:$0xf]
        %v699 = vld [vmem:[%s1 + $0x88] sm:$0xf]
        %v700 = vld [vmem:[%s1 + $0x8c] sm:$0xf]
        %v701 = vld [vmem:[%s1 + $0x90] sm:$0xf]
        %v702 = vld [vmem:[%s1 + $0x94] sm:$0xf]
        %v703 = vld [vmem:[%s1 + $0x98] sm:$0xf]
        %v704 = vld [vmem:[%s1 + $0x9c] sm:$0xf]
        %v705 = vld [vmem:[%s1 + $0xa0] sm:$0xf]
        %v706 = vld [vmem:[%s1 + $0xa4] sm:$0xf]
        %v707 = vld [vmem:[%s1 + $0xa8] sm:$0xf]
        %v708 = vld [vmem:[%s1 + $0xac] sm:$0xf]
        %v709 = vld [vmem:[%s1 + $0xb0] sm:$0xf]
        %v710 = vld [vmem:[%s1 + $0xb4] sm:$0xf]
        %v711 = vld [vmem:[%s1 + $0xb8] sm:$0xf]
        %v712 = vld [vmem:[%s1 + $0xbc] sm:$0xf]
        %v713 = vld [vmem:[%s1 + $0xc0] sm:$0xf]
        %v714 = vld [vmem:[%s1 + $0xc4] sm:$0xf]
        %v715 = vld [vmem:[%s1 + $0xc8] sm:$0xf]
        %v716 = vld [vmem:[%s1 + $0xcc] sm:$0xf]
        %v717 = vld [vmem:[%s1 + $0xd0] sm:$0xf]
        %v718 = vld [vmem:[%s1 + $0xd4] sm:$0xf]
        %v719 = vld [vmem:[%s1 + $0xd8] sm:$0xf]
        %v720 = vld [vmem:[%s1 + $0xdc] sm:$0xf]
        %v721 = vld [vmem:[%s1 + $0xe0] sm:$0xf]
        %v722 = vld [vmem:[%s1 + $0xe4] sm:$0xf]
        %v723 = vld [vmem:[%s1 + $0xe8] sm:$0xf]
        %v724 = vld [vmem:[%s1 + $0xec] sm:$0xf]
        %v725 = vld [vmem:[%s1 + $0xf0] sm:$0xf]
        %v726 = vld [vmem:[%s1 + $0xf4] sm:$0xf]
        %v727 = vld [vmem:[%s1 + $0xf8] sm:$0xf]
        %v728 = vld [vmem:[%s1 + $0xfc] sm:$0xf]
        %v729 = vld [vmem:[%s1 + $0x100] sm:$0xf]
        %v730 = vld [vmem:[%s1 + $0x104] sm:$0xf]
        %v731 = vld [vmem:[%s1 + $0x108] sm:$0xf]
        %v732 = vld [vmem:[%s1 + $0x10c] sm:$0xf]
        %v733 = vld [vmem:[%s1 + $0x110] sm:$0xf]
        %v734 = vld [vmem:[%s1 + $0x114] sm:$0xf]
        %v735 = vld [vmem:[%s1 + $0x118] sm:$0xf]
        %v736 = vld [vmem:[%s1 + $0x11c] sm:$0xf]
        %v737 = vld [vmem:[%s1 + $0x120] sm:$0xf]
        %v738 = vld [vmem:[%s1 + $0x124] sm:$0x3]
        %v739 = vld [vmem:[%s2] sm:$0x1]
        %vm740 = vcmask 253952
        %741 = vst.msk [vmem:[#allocation2] sm:$0x1] %vm740, %v739
        %v742 = vld [vmem:[%s2 + $0x1] sm:$0xf]
        %v817 = vunpack.c.l.b16 %v665
        %v818 = vunpack.c.l.b16 %v666
        %v819 = vunpack.c.l.b16 %v667
        %v820 = vunpack.c.l.b16 %v668
        %v821 = vunpack.c.l.b16 %v669
        %v822 = vunpack.c.l.b16 %v670
        %v823 = vunpack.c.l.b16 %v671
        %v824 = vunpack.c.l.b16 %v672
        %v825 = vunpack.c.l.b16 %v673
        %v826 = vunpack.c.l.b16 %v674
        %v827 = vunpack.c.l.b16 %v675
        %v828 = vunpack.c.l.b16 %v676
        %v829 = vunpack.c.l.b16 %v677
        %v830 = vunpack.c.l.b16 %v678
        %v831 = vunpack.c.l.b16 %v679
        %v832 = vunpack.c.l.b16 %v680
        %v833 = vunpack.c.l.b16 %v681
        %v834 = vunpack.c.l.b16 %v682
        %v835 = vunpack.c.l.b16 %v683
        %v836 = vunpack.c.l.b16 %v684
        %v837 = vunpack.c.l.b16 %v685
        %v838 = vunpack.c.l.b16 %v686
        %v839 = vunpack.c.l.b16 %v687
        %v840 = vunpack.c.l.b16 %v688
        %v841 = vunpack.c.l.b16 %v689
        %v842 = vunpack.c.l.b16 %v690
        %v843 = vunpack.c.l.b16 %v691
        %v844 = vunpack.c.l.b16 %v692
        %v845 = vunpack.c.l.b16 %v693
        %v846 = vunpack.c.l.b16 %v694
        %v847 = vunpack.c.l.b16 %v695
        %v848 = vunpack.c.l.b16 %v696
        %v849 = vunpack.c.l.b16 %v697
        %v850 = vunpack.c.l.b16 %v698
        %v851 = vunpack.c.l.b16 %v699
        %v852 = vunpack.c.l.b16 %v700
        %v853 = vunpack.c.l.b16 %v701
        %v854 = vunpack.c.l.b16 %v702
        %v855 = vunpack.c.l.b16 %v703
        %v856 = vunpack.c.l.b16 %v704
        %v857 = vunpack.c.l.b16 %v705
        %v858 = vunpack.c.l.b16 %v706
        %v859 = vunpack.c.l.b16 %v707
        %v860 = vunpack.c.l.b16 %v708
        %v861 = vunpack.c.l.b16 %v709
        %v862 = vunpack.c.l.b16 %v710
        %v863 = vunpack.c.l.b16 %v711
        %v864 = vunpack.c.l.b16 %v712
        %v865 = vunpack.c.l.b16 %v713
        %v866 = vunpack.c.l.b16 %v714
        %v867 = vunpack.c.l.b16 %v715
        %v868 = vunpack.c.l.b16 %v716
        %v869 = vunpack.c.l.b16 %v717
        %v870 = vunpack.c.l.b16 %v718
        %v871 = vunpack.c.l.b16 %v719
        %v872 = vunpack.c.l.b16 %v720
        %v873 = vunpack.c.l.b16 %v721
        %v874 = vunpack.c.l.b16 %v722
        %v875 = vunpack.c.l.b16 %v723
        %v876 = vunpack.c.l.b16 %v724
        %v877 = vunpack.c.l.b16 %v725
        %v878 = vunpack.c.l.b16 %v726
        %v879 = vunpack.c.l.b16 %v727
        %v880 = vunpack.c.l.b16 %v728
        %v881 = vunpack.c.l.b16 %v729
        %v882 = vunpack.c.l.b16 %v730
        %v883 = vunpack.c.l.b16 %v731
        %v884 = vunpack.c.l.b16 %v732
        %v885 = vunpack.c.l.b16 %v733
        %v886 = vunpack.c.l.b16 %v734
        %v887 = vunpack.c.l.b16 %v735
        %v888 = vunpack.c.l.b16 %v736
        %v889 = vunpack.c.l.b16 %v737
        %v890 = vunpack.c.l.b16 %v738
        %v891 = vpack.c.b16 %v818, %v817
        %v892 = vpack.c.b16 %v820, %v819
        %v893 = vpack.c.b16 %v822, %v821
        %v894 = vpack.c.b16 %v824, %v823
        %v895 = vpack.c.b16 %v826, %v825
        %v896 = vpack.c.b16 %v828, %v827
        %v897 = vpack.c.b16 %v830, %v829
        %v898 = vpack.c.b16 %v832, %v831
        %v899 = vpack.c.b16 %v834, %v833
        %v900 = vpack.c.b16 %v836, %v835
        %v901 = vpack.c.b16 %v838, %v837
        %v902 = vpack.c.b16 %v840, %v839
        %v903 = vpack.c.b16 %v842, %v841
        %v904 = vpack.c.b16 %v844, %v843
        %v905 = vpack.c.b16 %v846, %v845
        %v906 = vpack.c.b16 %v848, %v847
        %v907 = vpack.c.b16 %v850, %v849
        %v908 = vpack.c.b16 %v852, %v851
        %v909 = vpack.c.b16 %v854, %v853
        %v910 = vpack.c.b16 %v856, %v855
        %v911 = vpack.c.b16 %v858, %v857
        %v912 = vpack.c.b16 %v860, %v859
        %v913 = vpack.c.b16 %v862, %v861
        %v914 = vpack.c.b16 %v864, %v863
        %v915 = vpack.c.b16 %v866, %v865
        %v916 = vpack.c.b16 %v868, %v867
        %v917 = vpack.c.b16 %v870, %v869
        %v918 = vpack.c.b16 %v872, %v871
        %v919 = vpack.c.b16 %v874, %v873
        %v920 = vpack.c.b16 %v876, %v875
        %v921 = vpack.c.b16 %v878, %v877
        %v922 = vpack.c.b16 %v880, %v879
        %v923 = vpack.c.b16 %v882, %v881
        %v924 = vpack.c.b16 %v884, %v883
        %v925 = vpack.c.b16 %v886, %v885
        %v926 = vpack.c.b16 %v888, %v887
        %v927 = vpack.c.b16 %v890, %v889
        %vm964 = vcmask 621568
        %v966 = vsel %vm964, %v664, 0
        %vm968 = vcmask 1045504
        %v970 = vsel %vm968, %v927, 0
        %972 = vmatprep.subr.bf16.mxu0 0
        %973 = vmatpush1.bf16.msra.mxu0 %v891
        %974 = vmatprep.subr.bf16.mxu0 0
        %975 = vmatpush1.bf16.msra.mxu0 %v892
        %976 = vmatprep.subr.bf16.mxu0 0
        %977 = vmatpush1.bf16.msra.mxu0 %v893
        %978 = vmatprep.subr.bf16.mxu0 0
        %979 = vmatpush1.bf16.msra.mxu0 %v894
        %980 = vmatprep.subr.bf16.mxu0 0
        %981 = vmatpush1.bf16.msra.mxu0 %v895
        %982 = vmatprep.subr.bf16.mxu0 0
        %983 = vmatpush1.bf16.msra.mxu0 %v896
        %984 = vmatprep.subr.bf16.mxu0 0
        %985 = vmatpush1.bf16.msra.mxu0 %v897
        %986 = vmatprep.subr.bf16.mxu0 0
        %987 = vmatpush1.bf16.msra.mxu0 %v898
        %988 = vmatprep.subr.bf16.mxu0 0
        %989 = vmatpush1.bf16.msra.mxu0 %v899
        %990 = vmatprep.subr.bf16.mxu0 0
        %991 = vmatpush1.bf16.msra.mxu0 %v900
        %992 = vmatprep.subr.bf16.mxu0 0
        %993 = vmatpush1.bf16.msra.mxu0 %v901
        %994 = vmatprep.subr.bf16.mxu0 0
        %995 = vmatpush1.bf16.msra.mxu0 %v902
        %996 = vmatprep.subr.bf16.mxu0 0
        %997 = vmatpush1.bf16.msra.mxu0 %v903
        %998 = vmatprep.subr.bf16.mxu0 0
        %999 = vmatpush1.bf16.msra.mxu0 %v904
        %1000 = vmatprep.subr.bf16.mxu0 0
        %1001 = vmatpush1.bf16.msra.mxu0 %v905
        %1002 = vmatprep.subr.bf16.mxu0 0
        %1003 = vmatpush1.bf16.msra.mxu0 %v906
        %1004 = vmatprep.mubr.bf16.mxu0 %v661
        %1005 = vmatmul.mubr.bf16.gmra.mrb[0].mxu0 %v660
        %v1006 = vpop.f32.mrb[0].mxu0
        %v1007 = vadd.f32 %v742, %v1006
        %v1008 = vpop.f32.mrb[0].mxu0
        %v1009 = vpop.f32.mrb[0].mxu0
        %v1010 = vpop.f32.mrb[0].mxu0
        %1011 = vdwg.mxu0
        %1012 = vmatprep.subr.bf16.mxu0 0
        %1013 = vmatpush1.bf16.msra.mxu0 %v907
        %1014 = vmatprep.subr.bf16.mxu0 0
        %1015 = vmatpush1.bf16.msra.mxu0 %v908
        %1016 = vmatprep.subr.bf16.mxu0 0
        %1017 = vmatpush1.bf16.msra.mxu0 %v909
        %1018 = vmatprep.subr.bf16.mxu0 0
        %1019 = vmatpush1.bf16.msra.mxu0 %v910
        %1020 = vmatprep.subr.bf16.mxu0 0
        %1021 = vmatpush1.bf16.msra.mxu0 %v911
        %1022 = vmatprep.subr.bf16.mxu0 0
        %1023 = vmatpush1.bf16.msra.mxu0 %v912
        %1024 = vmatprep.subr.bf16.mxu0 0
        %1025 = vmatpush1.bf16.msra.mxu0 %v913
        %1026 = vmatprep.subr.bf16.mxu0 0
        %1027 = vmatpush1.bf16.msra.mxu0 %v914
        %1028 = vmatprep.subr.bf16.mxu0 0
        %1029 = vmatpush1.bf16.msra.mxu0 %v915
        %1030 = vmatprep.subr.bf16.mxu0 0
        %1031 = vmatpush1.bf16.msra.mxu0 %v916
        %1032 = vmatprep.subr.bf16.mxu0 0
        %1033 = vmatpush1.bf16.msra.mxu0 %v917
        %1034 = vmatprep.subr.bf16.mxu0 0
        %1035 = vmatpush1.bf16.msra.mxu0 %v918
        %1036 = vmatprep.subr.bf16.mxu0 0
        %1037 = vmatpush1.bf16.msra.mxu0 %v919
        %1038 = vmatprep.subr.bf16.mxu0 0
        %1039 = vmatpush1.bf16.msra.mxu0 %v920
        %1040 = vmatprep.subr.bf16.mxu0 0
        %1041 = vmatpush1.bf16.msra.mxu0 %v921
        %1042 = vmatprep.subr.bf16.mxu0 0
        %1043 = vmatpush1.bf16.msra.mxu0 %v922
        %1044 = vmatprep.mubr.bf16.mxu0 %v663
        %1045 = vmatmul.mubr.bf16.gmra.mrb[0].mxu0 %v662
        %v1046 = vpop.f32.mrb[0].mxu0
        %v1047 = vadd.f32 %v1007, %v1046
        %v1048 = vpop.f32.mrb[0].mxu0
        %v1049 = vpop.f32.mrb[0].mxu0
        %v1050 = vpop.f32.mrb[0].mxu0
        %1051 = vdwg.mxu0
        %1052 = vmatprep.subr.bf16.mxu0 0
        %1053 = vmatpush1.bf16.msra.mxu0 %v923
        %1054 = vmatprep.subr.bf16.mxu0 0
        %1055 = vmatpush1.bf16.msra.mxu0 %v924
        %1056 = vmatprep.subr.bf16.mxu0 0
        %1057 = vmatpush1.bf16.msra.mxu0 %v925
        %1058 = vmatprep.subr.bf16.mxu0 0
        %1059 = vmatpush1.bf16.msra.mxu0 %v926
        %1060 = vmatprep.subr.bf16.mxu0 0
        %1061 = vmatpush1.bf16.msra.mxu0 %v970
        %1062 = vmatprep.subr.bf16.mxu0 0
        %1063 = vmatpush1.bf16.msra.mxu0 0
        %1064 = vmatprep.subr.bf16.mxu0 0
        %1065 = vmatpush1.bf16.msra.mxu0 0
        %1066 = vmatprep.subr.bf16.mxu0 0
        %1067 = vmatpush1.bf16.msra.mxu0 0
        %1068 = vmatprep.subr.bf16.mxu0 0
        %1069 = vmatpush1.bf16.msra.mxu0 0
        %1070 = vmatprep.subr.bf16.mxu0 0
        %1071 = vmatpush1.bf16.msra.mxu0 0
        %1072 = vmatprep.subr.bf16.mxu0 0
        %1073 = vmatpush1.bf16.msra.mxu0 0
        %1074 = vmatprep.subr.bf16.mxu0 0
        %1075 = vmatpush1.bf16.msra.mxu0 0
        %1076 = vmatprep.subr.bf16.mxu0 0
        %1077 = vmatpush1.bf16.msra.mxu0 0
        %1078 = vmatprep.subr.bf16.mxu0 0
        %1079 = vmatpush1.bf16.msra.mxu0 0
        %1080 = vmatprep.subr.bf16.mxu0 0
        %1081 = vmatpush1.bf16.msra.mxu0 0
        %1082 = vmatprep.subr.bf16.mxu0 0
        %1083 = vmatpush1.bf16.msra.mxu0 0
        %1084 = vmatprep.mubr.bf16.mxu0 0
        %1085 = vmatmul.mubr.bf16.gmra.mrb[0].mxu0 %v966
        %v1086 = vpop.f32.mrb[0].mxu0
        %v1087 = vadd.f32 %v1047, %v1086
        %v1088 = vpop.f32.mrb[0].mxu0
        %v1089 = vpop.f32.mrb[0].mxu0
        %v1090 = vpop.f32.mrb[0].mxu0
        %1091 = vdwg.mxu0
        %vm1092 = vcmask 257024
        %1093 = vst.msk [vmem:[#allocation2 + $0x1] sm:$0xf] %vm1092, %v1087
      $region80: #{_lambda_.1} parent=75 // pred_fallthru
        _
      %v1094 = vld [vmem:[#allocation2] sm:$0x1f]
      %v1095 = vld [vmem:[%s605] sm:$0x1]
      %v1096 = vld [vmem:[%s605 + $0x1] sm:$0x1]
      %v1097 = vld [vmem:[%s605 + $0x2] sm:$0x1]
      %v1098 = vld [vmem:[%s605 + $0x3] sm:$0x1]
      %v1099 = vld [vmem:[%s605 + $0x4] sm:$0x1]
      %v1100 = vld [vmem:[%s605 + $0x5] sm:$0x1]
      %v1101 = vld [vmem:[%s605 + $0x6] sm:$0x1]
      %v1102 = vld [vmem:[%s605 + $0x7] sm:$0x1]
      %vm1103 = vcmask 258048
      %v1104 = vsel %vm1103, %v1094, 0.0
      %1105 = vadd.xlane.f32.xlu0 %v1104
      %v1106 = vpop.xlane.xlu0 %1105
      %v1107 = vrcp.pop 32.0
      %v1108 = vmul.f32 %v1106, %v1107
      %v1109 = vsub.f32 %v1094, %v1108
      %v1110 = vmul.f32 %v1109, %v1109
      %v1111 = vsel %vm1103, %v1110, 0.0
      %1112 = vadd.xlane.f32.xlu0 %v1111
      %v1113 = vpop.xlane.xlu0 %1112
      %v1114 = vmul.f32 %v1113, %v1107
      %v1115 = vadd.f32 %v1114, 1e-06
      %v1116 = vrsqrt.pop %v1115
      %v1117 = vmul.f32 %v1109, %v1116
      %v1118 = vlaneseq
      %v1119 = vshrl.u32 %v1118, 7
      %v1120 = vsub.s32 0, %v1119
      %v1121 = vrot.slane %v1095, %v1120
      %v1122 = vmul.f32 %v1117, %v1121
      %v1123 = vlaneseq
      %v1124 = vshrl.u32 %v1123, 7
      %v1125 = vsub.s32 0, %v1124
      %v1126 = vrot.slane %v1096, %v1125
      %v1127 = vadd.f32 %v1122, %v1126
      %v1128 = vpack.c.bf16 %v1127, %v1127
      %v1129 = vld [vmem:[%s624] sm:$0x1]
      %v1130 = vld [vmem:[%s624 + $0x1] sm:$0x1]
      %v1131 = vld [vmem:[%s624 + $0x2] sm:$0x1]
      %v1132 = vld [vmem:[%s610] sm:$0xf]
      %v1133 = vld [vmem:[%s610 + $0x4] sm:$0xf]
      %v1134 = vld [vmem:[%s610 + $0x8] sm:$0xf]
      %v1135 = vld [vmem:[%s610 + $0xc] sm:$0xf]
      %v1136 = vlaneseq
      %v1137 = vshrl.u32 %v1136, 7
      %v1138 = vsub.s32 0, %v1137
      %v1139 = vrot.slane %v1129, %v1138
      %v1144 = vunpack.c.l.b16 %v1132
      %v1145 = vunpack.c.l.b16 %v1133
      %v1146 = vunpack.c.l.b16 %v1134
      %v1147 = vunpack.c.l.b16 %v1135
      %v1148 = vpack.c.b16 %v1145, %v1144
      %v1149 = vpack.c.b16 %v1147, %v1146
      %vm1152 = vcmask 261120
      %v1154 = vsel %vm1152, %v1128, 0
      %1156 = vmatprep.subr.bf16.mxu0 0
      %1157 = vmatpush1.bf16.msra.mxu0 %v1148
      %1158 = vmatprep.subr.bf16.mxu0 0
      %1159 = vmatpush1.bf16.msra.mxu0 %v1149
      %1160 = vmatprep.subr.bf16.mxu0 0
      %1161 = vmatpush1.bf16.msra.mxu0 0
      %1162 = vmatprep.subr.bf16.mxu0 0
      %1163 = vmatpush1.bf16.msra.mxu0 0
      %1164 = vmatprep.subr.bf16.mxu0 0
      %1165 = vmatpush1.bf16.msra.mxu0 0
      %1166 = vmatprep.subr.bf16.mxu0 0
      %1167 = vmatpush1.bf16.msra.mxu0 0
      %1168 = vmatprep.subr.bf16.mxu0 0
      %1169 = vmatpush1.bf16.msra.mxu0 0
      %1170 = vmatprep.subr.bf16.mxu0 0
      %1171 = vmatpush1.bf16.msra.mxu0 0
      %1172 = vmatprep.subr.bf16.mxu0 0
      %1173 = vmatpush1.bf16.msra.mxu0 0
      %1174 = vmatprep.subr.bf16.mxu0 0
      %1175 = vmatpush1.bf16.msra.mxu0 0
      %1176 = vmatprep.subr.bf16.mxu0 0
      %1177 = vmatpush1.bf16.msra.mxu0 0
      %1178 = vmatprep.subr.bf16.mxu0 0
      %1179 = vmatpush1.bf16.msra.mxu0 0
      %1180 = vmatprep.subr.bf16.mxu0 0
      %1181 = vmatpush1.bf16.msra.mxu0 0
      %1182 = vmatprep.subr.bf16.mxu0 0
      %1183 = vmatpush1.bf16.msra.mxu0 0
      %1184 = vmatprep.subr.bf16.mxu0 0
      %1185 = vmatpush1.bf16.msra.mxu0 0
      %1186 = vmatprep.subr.bf16.mxu0 0
      %1187 = vmatpush1.bf16.msra.mxu0 0
      %1188 = vmatprep.mubr.bf16.mxu0 0
      %1189 = vmatmul.mubr.bf16.gmra.mrb[0].mxu0 %v1154
      %v1190 = vpop.f32.mrb[0].mxu0
      %v1191 = vadd.f32 %v1139, %v1190
      %v1192 = vpop.f32.mrb[0].mxu0
      %v1193 = vpop.f32.mrb[0].mxu0
      %v1194 = vpop.f32.mrb[0].mxu0
      %1195 = vdwg.mxu0
      %v1196 = vpack.c.bf16 %v1191, %v1191
      %v1197 = vld [vmem:[%s615] sm:$0xf]
      %v1198 = vld [vmem:[%s615 + $0x4] sm:$0xf]
      %v1199 = vld [vmem:[%s615 + $0x8] sm:$0xf]
      %v1200 = vld [vmem:[%s615 + $0xc] sm:$0xf]
      %v1201 = vlaneseq
      %v1202 = vshrl.u32 %v1201, 7
      %v1203 = vsub.s32 0, %v1202
      %v1204 = vrot.slane %v1130, %v1203
      %v1209 = vunpack.c.l.b16 %v1197
      %v1210 = vunpack.c.l.b16 %v1198
      %v1211 = vunpack.c.l.b16 %v1199
      %v1212 = vunpack.c.l.b16 %v1200
      %v1213 = vpack.c.b16 %v1210, %v1209
      %v1214 = vpack.c.b16 %v1212, %v1211
      %1217 = vmatprep.subr.bf16.mxu0 0
      %1218 = vmatpush1.bf16.msra.mxu0 %v1213
      %1219 = vmatprep.subr.bf16.mxu0 0
      %1220 = vmatpush1.bf16.msra.mxu0 %v1214
      %1221 = vmatprep.subr.bf16.mxu0 0
      %1222 = vmatpush1.bf16.msra.mxu0 0
      %1223 = vmatprep.subr.bf16.mxu0 0
      %1224 = vmatpush1.bf16.msra.mxu0 0
      %1225 = vmatprep.subr.bf16.mxu0 0
      %1226 = vmatpush1.bf16.msra.mxu0 0
      %1227 = vmatprep.subr.bf16.mxu0 0
      %1228 = vmatpush1.bf16.msra.mxu0 0
      %1229 = vmatprep.subr.bf16.mxu0 0
      %1230 = vmatpush1.bf16.msra.mxu0 0
      %1231 = vmatprep.subr.bf16.mxu0 0
      %1232 = vmatpush1.bf16.msra.mxu0 0
      %1233 = vmatprep.subr.bf16.mxu0 0
      %1234 = vmatpush1.bf16.msra.mxu0 0
      %1235 = vmatprep.subr.bf16.mxu0 0
      %1236 = vmatpush1.bf16.msra.mxu0 0
      %1237 = vmatprep.subr.bf16.mxu0 0
      %1238 = vmatpush1.bf16.msra.mxu0 0
      %1239 = vmatprep.subr.bf16.mxu0 0
      %1240 = vmatpush1.bf16.msra.mxu0 0
      %1241 = vmatprep.subr.bf16.mxu0 0
      %1242 = vmatpush1.bf16.msra.mxu0 0
      %1243 = vmatprep.subr.bf16.mxu0 0
      %1244 = vmatpush1.bf16.msra.mxu0 0
      %1245 = vmatprep.subr.bf16.mxu0 0
      %1246 = vmatpush1.bf16.msra.mxu0 0
      %1247 = vmatprep.subr.bf16.mxu0 0
      %1248 = vmatpush1.bf16.msra.mxu0 0
      %1249 = vmatprep.mubr.bf16.mxu0 0
      %1250 = vmatmul.mubr.bf16.gmra.mrb[0].mxu0 %v1154
      %v1251 = vpop.f32.mrb[0].mxu0
      %v1252 = vadd.f32 %v1204, %v1251
      %v1253 = vpop.f32.mrb[0].mxu0
      %v1254 = vpop.f32.mrb[0].mxu0
      %v1255 = vpop.f32.mrb[0].mxu0
      %1256 = vdwg.mxu0
      %v1257 = vpack.c.bf16 %v1252, %v1252
      %v1258 = vld [vmem:[%s620] sm:$0xf]
      %v1259 = vld [vmem:[%s620 + $0x4] sm:$0xf]
      %v1260 = vld [vmem:[%s620 + $0x8] sm:$0xf]
      %v1261 = vld [vmem:[%s620 + $0xc] sm:$0xf]
      %v1262 = vlaneseq
      %v1263 = vshrl.u32 %v1262, 7
      %v1264 = vsub.s32 0, %v1263
      %v1265 = vrot.slane %v1131, %v1264
      %v1270 = vunpack.c.l.b16 %v1258
      %v1271 = vunpack.c.l.b16 %v1259
      %v1272 = vunpack.c.l.b16 %v1260
      %v1273 = vunpack.c.l.b16 %v1261
      %v1274 = vpack.c.b16 %v1271, %v1270
      %v1275 = vpack.c.b16 %v1273, %v1272
      %1278 = vmatprep.subr.bf16.mxu0 0
      %1279 = vmatpush1.bf16.msra.mxu0 %v1274
      %1280 = vmatprep.subr.bf16.mxu0 0
      %1281 = vmatpush1.bf16.msra.mxu0 %v1275
      %1282 = vmatprep.subr.bf16.mxu0 0
      %1283 = vmatpush1.bf16.msra.mxu0 0
      %1284 = vmatprep.subr.bf16.mxu0 0
      %1285 = vmatpush1.bf16.msra.mxu0 0
      %1286 = vmatprep.subr.bf16.mxu0 0
      %1287 = vmatpush1.bf16.msra.mxu0 0
      %1288 = vmatprep.subr.bf16.mxu0 0
      %1289 = vmatpush1.bf16.msra.mxu0 0
      %1290 = vmatprep.subr.bf16.mxu0 0
      %1291 = vmatpush1.bf16.msra.mxu0 0
      %1292 = vmatprep.subr.bf16.mxu0 0
      %1293 = vmatpush1.bf16.msra.mxu0 0
      %1294 = vmatprep.subr.bf16.mxu0 0
      %1295 = vmatpush1.bf16.msra.mxu0 0
      %1296 = vmatprep.subr.bf16.mxu0 0
      %1297 = vmatpush1.bf16.msra.mxu0 0
      %1298 = vmatprep.subr.bf16.mxu0 0
      %1299 = vmatpush1.bf16.msra.mxu0 0
      %1300 = vmatprep.subr.bf16.mxu0 0
      %1301 = vmatpush1.bf16.msra.mxu0 0
      %1302 = vmatprep.subr.bf16.mxu0 0
      %1303 = vmatpush1.bf16.msra.mxu0 0
      %1304 = vmatprep.subr.bf16.mxu0 0
      %1305 = vmatpush1.bf16.msra.mxu0 0
      %1306 = vmatprep.subr.bf16.mxu0 0
      %1307 = vmatpush1.bf16.msra.mxu0 0
      %1308 = vmatprep.subr.bf16.mxu0 0
      %1309 = vmatpush1.bf16.msra.mxu0 0
      %1310 = vmatprep.mubr.bf16.mxu0 0
      %1311 = vmatmul.mubr.bf16.gmra.mrb[0].mxu0 %v1154
      %v1312 = vpop.f32.mrb[0].mxu0
      %v1313 = vadd.f32 %v1265, %v1312
      %v1314 = vpop.f32.mrb[0].mxu0
      %v1315 = vpop.f32.mrb[0].mxu0
      %v1316 = vpop.f32.mrb[0].mxu0
      %1317 = vdwg.mxu0
      %v1318 = vpack.c.bf16 %v1313, %v1313
      %vm1319 = vcmask 130048
      %v1321 = vsel %vm1319, %v1196, 0
      %v1324 = vsel %vm1319, %v1257, 0
      %1326 = vmatprep.subr.bf16.mxu0 0
      %1327 = vmatpush1.bf16.xpose.msra.mxu0 %v1324
      %1328 = vmatprep.subr.bf16.mxu0 0
      %1329 = vmatpush1.bf16.xpose.msra.mxu0 0
      %1330 = vmatprep.subr.bf16.mxu0 0
      %1331 = vmatpush1.bf16.xpose.msra.mxu0 0
      %1332 = vmatprep.subr.bf16.mxu0 0
      %1333 = vmatpush1.bf16.xpose.msra.mxu0 0
      %1334 = vmatprep.subr.bf16.mxu0 0
      %1335 = vmatpush1.bf16.xpose.msra.mxu0 0
      %1336 = vmatprep.subr.bf16.mxu0 0
      %1337 = vmatpush1.bf16.xpose.msra.mxu0 0
      %1338 = vmatprep.subr.bf16.mxu0 0
      %1339 = vmatpush1.bf16.xpose.msra.mxu0 0
      %1340 = vmatprep.subr.bf16.mxu0 0
      %1341 = vmatpush1.bf16.xpose.msra.mxu0 0
      %1342 = vmatprep.subr.bf16.mxu0 0
      %1343 = vmatpush1.bf16.xpose.msra.mxu0 0
      %1344 = vmatprep.subr.bf16.mxu0 0
      %1345 = vmatpush1.bf16.xpose.msra.mxu0 0
      %1346 = vmatprep.subr.bf16.mxu0 0
      %1347 = vmatpush1.bf16.xpose.msra.mxu0 0
      %1348 = vmatprep.subr.bf16.mxu0 0
      %1349 = vmatpush1.bf16.xpose.msra.mxu0 0
      %1350 = vmatprep.subr.bf16.mxu0 0
      %1351 = vmatpush1.bf16.xpose.msra.mxu0 0
      %1352 = vmatprep.subr.bf16.mxu0 0
      %1353 = vmatpush1.bf16.xpose.msra.mxu0 0
      %1354 = vmatprep.subr.bf16.mxu0 0
      %1355 = vmatpush1.bf16.xpose.msra.mxu0 0
      %1356 = vmatprep.subr.bf16.mxu0 0
      %1357 = vmatpush1.bf16.xpose.msra.mxu0 0
      %1358 = vmatprep.mubr.bf16.mxu0 0
      %1359 = vmatmul.mubr.bf16.gmra.mrb[0].mxu0 %v1321
      %v1360 = vpop.f32.mrb[0].mxu0
      %v1361 = vadd.f32 0.0, %v1360
      %v1362 = vpop.f32.mrb[0].mxu0
      %v1363 = vpop.f32.mrb[0].mxu0
      %v1364 = vpop.f32.mrb[0].mxu0
      %1365 = vdwg.mxu0
      %vm1366 = vcmask 36864
      %v1367 = vsel %vm1366, %v1361, -inf
      %1368 = vmax.xlane.f32.xlu0 %v1367
      %v1369 = vpop.xlane.xlu0 %1368
      %v1370 = vsub.f32 %v1361, %v1369
      %v1371 = vmul.f32 %v1370, 1.442695
      %v1372 = vpow.pop %v1371
      %v1373 = vsel %vm1366, %v1372, 0.0
      %1374 = vadd.xlane.f32.xlu0 %v1373
      %v1375 = vpop.xlane.xlu0 %1374
      %v1376 = vrcp.pop %v1375
      %v1377 = vmul.f32 %v1372, %v1376
      %v1378 = vpack.c.bf16 %v1377, %v1377
      %vm1379 = vcmask 39936
      %v1381 = vsel %vm1379, %v1378, 0
      %vm1383 = vcmask 1041408
      %vm1384 = vcmask 1042432
      %v1385 = vsel %vm1383, 4294967295, 65535
      %v1386 = vsel %vm1384, %v1385, 0
      %v1388 = vand.u32 %v1318, %v1386
      %1390 = vmatprep.subr.bf16.mxu0 0
      %1391 = vmatpush1.bf16.msra.mxu0 %v1388
      %1392 = vmatprep.subr.bf16.mxu0 0
      %1393 = vmatpush1.bf16.msra.mxu0 0
      %1394 = vmatprep.subr.bf16.mxu0 0
      %1395 = vmatpush1.bf16.msra.mxu0 0
      %1396 = vmatprep.subr.bf16.mxu0 0
      %1397 = vmatpush1.bf16.msra.mxu0 0
      %1398 = vmatprep.subr.bf16.mxu0 0
      %1399 = vmatpush1.bf16.msra.mxu0 0
      %1400 = vmatprep.subr.bf16.mxu0 0
      %1401 = vmatpush1.bf16.msra.mxu0 0
      %1402 = vmatprep.subr.bf16.mxu0 0
      %1403 = vmatpush1.bf16.msra.mxu0 0
      %1404 = vmatprep.subr.bf16.mxu0 0
      %1405 = vmatpush1.bf16.msra.mxu0 0
      %1406 = vmatprep.subr.bf16.mxu0 0
      %1407 = vmatpush1.bf16.msra.mxu0 0
      %1408 = vmatprep.subr.bf16.mxu0 0
      %1409 = vmatpush1.bf16.msra.mxu0 0
      %1410 = vmatprep.subr.bf16.mxu0 0
      %1411 = vmatpush1.bf16.msra.mxu0 0
      %1412 = vmatprep.subr.bf16.mxu0 0
      %1413 = vmatpush1.bf16.msra.mxu0 0
      %1414 = vmatprep.subr.bf16.mxu0 0
      %1415 = vmatpush1.bf16.msra.mxu0 0
      %1416 = vmatprep.subr.bf16.mxu0 0
      %1417 = vmatpush1.bf16.msra.mxu0 0
      %1418 = vmatprep.subr.bf16.mxu0 0
      %1419 = vmatpush1.bf16.msra.mxu0 0
      %1420 = vmatprep.subr.bf16.mxu0 0
      %1421 = vmatpush1.bf16.msra.mxu0 0
      %1422 = vmatprep.mubr.bf16.mxu0 0
      %1423 = vmatmul.mubr.bf16.gmra.mrb[0].mxu0 %v1381
      %v1424 = vpop.f32.mrb[0].mxu0
      %v1425 = vadd.f32 0.0, %v1424
      %v1426 = vpop.f32.mrb[0].mxu0
      %v1427 = vpop.f32.mrb[0].mxu0
      %v1428 = vpop.f32.mrb[0].mxu0
      %1429 = vdwg.mxu0
      %v1430 = vpack.c.bf16 %v1425, %v1425
      %v1431 = vld [vmem:[%s629] sm:$0xf]
      %v1432 = vld [vmem:[%s629 + $0x4] sm:$0xf]
      %v1433 = vld [vmem:[%s624 + $0x3] sm:$0x1]
      %v1434 = vld [vmem:[%s624 + $0x4] sm:$0x1]
      %v1435 = vld [vmem:[%s624 + $0x5] sm:$0x1]
      %s1436 = scalar_lea.vmem %s610, 16
      %v1437 = vld [vmem:[%s1436] sm:$0xf]
      %v1438 = vld [vmem:[%s1436 + $0x4] sm:$0xf]
      %v1439 = vld [vmem:[%s1436 + $0x8] sm:$0xf]
      %v1440 = vld [vmem:[%s1436 + $0xc] sm:$0xf]
      %v1441 = vlaneseq
      %v1442 = vshrl.u32 %v1441, 7
      %v1443 = vsub.s32 0, %v1442
      %v1444 = vrot.slane %v1433, %v1443
      %v1449 = vunpack.c.l.b16 %v1437
      %v1450 = vunpack.c.l.b16 %v1438
      %v1451 = vunpack.c.l.b16 %v1439
      %v1452 = vunpack.c.l.b16 %v1440
      %v1453 = vpack.c.b16 %v1450, %v1449
      %v1454 = vpack.c.b16 %v1452, %v1451
      %1457 = vmatprep.subr.bf16.mxu0 0
      %1458 = vmatpush1.bf16.msra.mxu0 %v1453
      %1459 = vmatprep.subr.bf16.mxu0 0
      %1460 = vmatpush1.bf16.msra.mxu0 %v1454
      %1461 = vmatprep.subr.bf16.mxu0 0
      %1462 = vmatpush1.bf16.msra.mxu0 0
      %1463 = vmatprep.subr.bf16.mxu0 0
      %1464 = vmatpush1.bf16.msra.mxu0 0
      %1465 = vmatprep.subr.bf16.mxu0 0
      %1466 = vmatpush1.bf16.msra.mxu0 0
      %1467 = vmatprep.subr.bf16.mxu0 0
      %1468 = vmatpush1.bf16.msra.mxu0 0
      %1469 = vmatprep.subr.bf16.mxu0 0
      %1470 = vmatpush1.bf16.msra.mxu0 0
      %1471 = vmatprep.subr.bf16.mxu0 0
      %1472 = vmatpush1.bf16.msra.mxu0 0
      %1473 = vmatprep.subr.bf16.mxu0 0
      %1474 = vmatpush1.bf16.msra.mxu0 0
      %1475 = vmatprep.subr.bf16.mxu0 0
      %1476 = vmatpush1.bf16.msra.mxu0 0
      %1477 = vmatprep.subr.bf16.mxu0 0
      %1478 = vmatpush1.bf16.msra.mxu0 0
      %1479 = vmatprep.subr.bf16.mxu0 0
      %1480 = vmatpush1.bf16.msra.mxu0 0
      %1481 = vmatprep.subr.bf16.mxu0 0
      %1482 = vmatpush1.bf16.msra.mxu0 0
      %1483 = vmatprep.subr.bf16.mxu0 0
      %1484 = vmatpush1.bf16.msra.mxu0 0
      %1485 = vmatprep.subr.bf16.mxu0 0
      %1486 = vmatpush1.bf16.msra.mxu0 0
      %1487 = vmatprep.subr.bf16.mxu0 0
      %1488 = vmatpush1.bf16.msra.mxu0 0
      %1489 = vmatprep.mubr.bf16.mxu0 0
      %1490 = vmatmul.mubr.bf16.gmra.mrb[0].mxu0 %v1154
      %v1491 = vpop.f32.mrb[0].mxu0
      %v1492 = vadd.f32 %v1444, %v1491
      %v1493 = vpop.f32.mrb[0].mxu0
      %v1494 = vpop.f32.mrb[0].mxu0
      %v1495 = vpop.f32.mrb[0].mxu0
      %1496 = vdwg.mxu0
      %v1497 = vpack.c.bf16 %v1492, %v1492
      %s1498 = scalar_lea.vmem %s615, 16
      %v1499 = vld [vmem:[%s1498] sm:$0xf]
      %v1500 = vld [vmem:[%s1498 + $0x4] sm:$0xf]
      %v1501 = vld [vmem:[%s1498 + $0x8] sm:$0xf]
      %v1502 = vld [vmem:[%s1498 + $0xc] sm:$0xf]
      %v1503 = vlaneseq
      %v1504 = vshrl.u32 %v1503, 7
      %v1505 = vsub.s32 0, %v1504
      %v1506 = vrot.slane %v1434, %v1505
      %v1511 = vunpack.c.l.b16 %v1499
      %v1512 = vunpack.c.l.b16 %v1500
      %v1513 = vunpack.c.l.b16 %v1501
      %v1514 = vunpack.c.l.b16 %v1502
      %v1515 = vpack.c.b16 %v1512, %v1511
      %v1516 = vpack.c.b16 %v1514, %v1513
      %1519 = vmatprep.subr.bf16.mxu0 0
      %1520 = vmatpush1.bf16.msra.mxu0 %v1515
      %1521 = vmatprep.subr.bf16.mxu0 0
      %1522 = vmatpush1.bf16.msra.mxu0 %v1516
      %1523 = vmatprep.subr.bf16.mxu0 0
      %1524 = vmatpush1.bf16.msra.mxu0 0
      %1525 = vmatprep.subr.bf16.mxu0 0
      %1526 = vmatpush1.bf16.msra.mxu0 0
      %1527 = vmatprep.subr.bf16.mxu0 0
      %1528 = vmatpush1.bf16.msra.mxu0 0
      %1529 = vmatprep.subr.bf16.mxu0 0
      %1530 = vmatpush1.bf16.msra.mxu0 0
      %1531 = vmatprep.subr.bf16.mxu0 0
      %1532 = vmatpush1.bf16.msra.mxu0 0
      %1533 = vmatprep.subr.bf16.mxu0 0
      %1534 = vmatpush1.bf16.msra.mxu0 0
      %1535 = vmatprep.subr.bf16.mxu0 0
      %1536 = vmatpush1.bf16.msra.mxu0 0
      %1537 = vmatprep.subr.bf16.mxu0 0
      %1538 = vmatpush1.bf16.msra.mxu0 0
      %1539 = vmatprep.subr.bf16.mxu0 0
      %1540 = vmatpush1.bf16.msra.mxu0 0
      %1541 = vmatprep.subr.bf16.mxu0 0
      %1542 = vmatpush1.bf16.msra.mxu0 0
      %1543 = vmatprep.subr.bf16.mxu0 0
      %1544 = vmatpush1.bf16.msra.mxu0 0
      %1545 = vmatprep.subr.bf16.mxu0 0
      %1546 = vmatpush1.bf16.msra.mxu0 0
      %1547 = vmatprep.subr.bf16.mxu0 0
      %1548 = vmatpush1.bf16.msra.mxu0 0
      %1549 = vmatprep.subr.bf16.mxu0 0
      %1550 = vmatpush1.bf16.msra.mxu0 0
      %1551 = vmatprep.mubr.bf16.mxu0 0
      %1552 = vmatmul.mubr.bf16.gmra.mrb[0].mxu0 %v1154
      %v1553 = vpop.f32.mrb[0].mxu0
      %v1554 = vadd.f32 %v1506, %v1553
      %v1555 = vpop.f32.mrb[0].mxu0
      %v1556 = vpop.f32.mrb[0].mxu0
      %v1557 = vpop.f32.mrb[0].mxu0
      %1558 = vdwg.mxu0
      %v1559 = vpack.c.bf16 %v1554, %v1554
      %s1560 = scalar_lea.vmem %s620, 16
      %v1561 = vld [vmem:[%s1560] sm:$0xf]
      %v1562 = vld [vmem:[%s1560 + $0x4] sm:$0xf]
      %v1563 = vld [vmem:[%s1560 + $0x8] sm:$0xf]
      %v1564 = vld [vmem:[%s1560 + $0xc] sm:$0xf]
      %v1565 = vlaneseq
      %v1566 = vshrl.u32 %v1565, 7
      %v1567 = vsub.s32 0, %v1566
      %v1568 = vrot.slane %v1435, %v1567
      %v1573 = vunpack.c.l.b16 %v1561
      %v1574 = vunpack.c.l.b16 %v1562
      %v1575 = vunpack.c.l.b16 %v1563
      %v1576 = vunpack.c.l.b16 %v1564
      %v1577 = vpack.c.b16 %v1574, %v1573
      %v1578 = vpack.c.b16 %v1576, %v1575
      %1581 = vmatprep.subr.bf16.mxu0 0
      %1582 = vmatpush1.bf16.msra.mxu0 %v1577
      %1583 = vmatprep.subr.bf16.mxu0 0
      %1584 = vmatpush1.bf16.msra.mxu0 %v1578
      %1585 = vmatprep.subr.bf16.mxu0 0
      %1586 = vmatpush1.bf16.msra.mxu0 0
      %1587 = vmatprep.subr.bf16.mxu0 0
      %1588 = vmatpush1.bf16.msra.mxu0 0
      %1589 = vmatprep.subr.bf16.mxu0 0
      %1590 = vmatpush1.bf16.msra.mxu0 0
      %1591 = vmatprep.subr.bf16.mxu0 0
      %1592 = vmatpush1.bf16.msra.mxu0 0
      %1593 = vmatprep.subr.bf16.mxu0 0
      %1594 = vmatpush1.bf16.msra.mxu0 0
      %1595 = vmatprep.subr.bf16.mxu0 0
      %1596 = vmatpush1.bf16.msra.mxu0 0
      %1597 = vmatprep.subr.bf16.mxu0 0
      %1598 = vmatpush1.bf16.msra.mxu0 0
      %1599 = vmatprep.subr.bf16.mxu0 0
      %1600 = vmatpush1.bf16.msra.mxu0 0
      %1601 = vmatprep.subr.bf16.mxu0 0
      %1602 = vmatpush1.bf16.msra.mxu0 0
      %1603 = vmatprep.subr.bf16.mxu0 0
      %1604 = vmatpush1.bf16.msra.mxu0 0
      %1605 = vmatprep.subr.bf16.mxu0 0
      %1606 = vmatpush1.bf16.msra.mxu0 0
      %1607 = vmatprep.subr.bf16.mxu0 0
      %1608 = vmatpush1.bf16.msra.mxu0 0
      %1609 = vmatprep.subr.bf16.mxu0 0
      %1610 = vmatpush1.bf16.msra.mxu0 0
      %1611 = vmatprep.subr.bf16.mxu0 0
      %1612 = vmatpush1.bf16.msra.mxu0 0
      %1613 = vmatprep.mubr.bf16.mxu0 0
      %1614 = vmatmul.mubr.bf16.gmra.mrb[0].mxu0 %v1154
      %v1615 = vpop.f32.mrb[0].mxu0
      %v1616 = vadd.f32 %v1568, %v1615
      %v1617 = vpop.f32.mrb[0].mxu0
      %v1618 = vpop.f32.mrb[0].mxu0
      %v1619 = vpop.f32.mrb[0].mxu0
      %1620 = vdwg.mxu0
      %v1621 = vpack.c.bf16 %v1616, %v1616
      %v1623 = vsel %vm1319, %v1497, 0
      %v1626 = vsel %vm1319, %v1559, 0
      %1628 = vmatprep.subr.bf16.mxu0 0
      %1629 = vmatpush1.bf16.xpose.msra.mxu0 %v1626
      %1630 = vmatprep.subr.bf16.mxu0 0
      %1631 = vmatpush1.bf16.xpose.msra.mxu0 0
      %1632 = vmatprep.subr.bf16.mxu0 0
      %1633 = vmatpush1.bf16.xpose.msra.mxu0 0
      %1634 = vmatprep.subr.bf16.mxu0 0
      %1635 = vmatpush1.bf16.xpose.msra.mxu0 0
      %1636 = vmatprep.subr.bf16.mxu0 0
      %1637 = vmatpush1.bf16.xpose.msra.mxu0 0
      %1638 = vmatprep.subr.bf16.mxu0 0
      %1639 = vmatpush1.bf16.xpose.msra.mxu0 0
      %1640 = vmatprep.subr.bf16.mxu0 0
      %1641 = vmatpush1.bf16.xpose.msra.mxu0 0
      %1642 = vmatprep.subr.bf16.mxu0 0
      %1643 = vmatpush1.bf16.xpose.msra.mxu0 0
      %1644 = vmatprep.subr.bf16.mxu0 0
      %1645 = vmatpush1.bf16.xpose.msra.mxu0 0
      %1646 = vmatprep.subr.bf16.mxu0 0
      %1647 = vmatpush1.bf16.xpose.msra.mxu0 0
      %1648 = vmatprep.subr.bf16.mxu0 0
      %1649 = vmatpush1.bf16.xpose.msra.mxu0 0
      %1650 = vmatprep.subr.bf16.mxu0 0
      %1651 = vmatpush1.bf16.xpose.msra.mxu0 0
      %1652 = vmatprep.subr.bf16.mxu0 0
      %1653 = vmatpush1.bf16.xpose.msra.mxu0 0
      %1654 = vmatprep.subr.bf16.mxu0 0
      %1655 = vmatpush1.bf16.xpose.msra.mxu0 0
      %1656 = vmatprep.subr.bf16.mxu0 0
      %1657 = vmatpush1.bf16.xpose.msra.mxu0 0
      %1658 = vmatprep.subr.bf16.mxu0 0
      %1659 = vmatpush1.bf16.xpose.msra.mxu0 0
      %1660 = vmatprep.mubr.bf16.mxu0 0
      %1661 = vmatmul.mubr.bf16.gmra.mrb[0].mxu0 %v1623
      %v1662 = vpop.f32.mrb[0].mxu0
      %v1663 = vadd.f32 0.0, %v1662
      %v1664 = vpop.f32.mrb[0].mxu0
      %v1665 = vpop.f32.mrb[0].mxu0
      %v1666 = vpop.f32.mrb[0].mxu0
      %1667 = vdwg.mxu0
      %v1668 = vsel %vm1366, %v1663, -inf
      %1669 = vmax.xlane.f32.xlu0 %v1668
      %v1670 = vpop.xlane.xlu0 %1669
      %v1671 = vsub.f32 %v1663, %v1670
      %v1672 = vmul.f32 %v1671, 1.442695
      %v1673 = vpow.pop %v1672
      %v1674 = vsel %vm1366, %v1673, 0.0
      %1675 = vadd.xlane.f32.xlu0 %v1674
      %v1676 = vpop.xlane.xlu0 %1675
      %v1677 = vrcp.pop %v1676
      %v1678 = vmul.f32 %v1673, %v1677
      %v1679 = vpack.c.bf16 %v1678, %v1678
      %v1681 = vsel %vm1379, %v1679, 0
      %v1684 = vand.u32 %v1621, %v1386
      %1686 = vmatprep.subr.bf16.mxu0 0
      %1687 = vmatpush1.bf16.msra.mxu0 %v1684
      %1688 = vmatprep.subr.bf16.mxu0 0
      %1689 = vmatpush1.bf16.msra.mxu0 0
      %1690 = vmatprep.subr.bf16.mxu0 0
      %1691 = vmatpush1.bf16.msra.mxu0 0
      %1692 = vmatprep.subr.bf16.mxu0 0
      %1693 = vmatpush1.bf16.msra.mxu0 0
      %1694 = vmatprep.subr.bf16.mxu0 0
      %1695 = vmatpush1.bf16.msra.mxu0 0
      %1696 = vmatprep.subr.bf16.mxu0 0
      %1697 = vmatpush1.bf16.msra.mxu0 0
      %1698 = vmatprep.subr.bf16.mxu0 0
      %1699 = vmatpush1.bf16.msra.mxu0 0
      %1700 = vmatprep.subr.bf16.mxu0 0
      %1701 = vmatpush1.bf16.msra.mxu0 0
      %1702 = vmatprep.subr.bf16.mxu0 0
      %1703 = vmatpush1.bf16.msra.mxu0 0
      %1704 = vmatprep.subr.bf16.mxu0 0
      %1705 = vmatpush1.bf16.msra.mxu0 0
      %1706 = vmatprep.subr.bf16.mxu0 0
      %1707 = vmatpush1.bf16.msra.mxu0 0
      %1708 = vmatprep.subr.bf16.mxu0 0
      %1709 = vmatpush1.bf16.msra.mxu0 0
      %1710 = vmatprep.subr.bf16.mxu0 0
      %1711 = vmatpush1.bf16.msra.mxu0 0
      %1712 = vmatprep.subr.bf16.mxu0 0
      %1713 = vmatpush1.bf16.msra.mxu0 0
      %1714 = vmatprep.subr.bf16.mxu0 0
      %1715 = vmatpush1.bf16.msra.mxu0 0
      %1716 = vmatprep.subr.bf16.mxu0 0
      %1717 = vmatpush1.bf16.msra.mxu0 0
      %1718 = vmatprep.mubr.bf16.mxu0 0
      %1719 = vmatmul.mubr.bf16.gmra.mrb[0].mxu0 %v1681
      %v1720 = vpop.f32.mrb[0].mxu0
      %v1721 = vadd.f32 0.0, %v1720
      %v1722 = vpop.f32.mrb[0].mxu0
      %v1723 = vpop.f32.mrb[0].mxu0
      %v1724 = vpop.f32.mrb[0].mxu0
      %1725 = vdwg.mxu0
      %v1726 = vpack.c.bf16 %v1721, %v1721
      %s1727 = scalar_lea.vmem %s629, 8
      %v1728 = vld [vmem:[%s1727] sm:$0xf]
      %v1729 = vld [vmem:[%s1727 + $0x4] sm:$0xf]
      %v1732 = vunpack.c.l.b16 %v1728
      %v1733 = vunpack.c.l.b16 %v1729
      %v1734 = vpack.c.b16 %v1733, %v1732
      %v1737 = vsel %vm1319, %v1726, 0
      %1739 = vmatprep.subr.bf16.mxu0 0
      %1740 = vmatpush1.bf16.msra.mxu0 %v1734
      %1741 = vmatprep.subr.bf16.mxu0 0
      %1742 = vmatpush1.bf16.msra.mxu0 0
      %1743 = vmatprep.subr.bf16.mxu0 0
      %1744 = vmatpush1.bf16.msra.mxu0 0
      %1745 = vmatprep.subr.bf16.mxu0 0
      %1746 = vmatpush1.bf16.msra.mxu0 0
      %1747 = vmatprep.subr.bf16.mxu0 0
      %1748 = vmatpush1.bf16.msra.mxu0 0
      %1749 = vmatprep.subr.bf16.mxu0 0
      %1750 = vmatpush1.bf16.msra.mxu0 0
      %1751 = vmatprep.subr.bf16.mxu0 0
      %1752 = vmatpush1.bf16.msra.mxu0 0
      %1753 = vmatprep.subr.bf16.mxu0 0
      %1754 = vmatpush1.bf16.msra.mxu0 0
      %1755 = vmatprep.subr.bf16.mxu0 0
      %1756 = vmatpush1.bf16.msra.mxu0 0
      %1757 = vmatprep.subr.bf16.mxu0 0
      %1758 = vmatpush1.bf16.msra.mxu0 0
      %1759 = vmatprep.subr.bf16.mxu0 0
      %1760 = vmatpush1.bf16.msra.mxu0 0
      %1761 = vmatprep.subr.bf16.mxu0 0
      %1762 = vmatpush1.bf16.msra.mxu0 0
      %1763 = vmatprep.subr.bf16.mxu0 0
      %1764 = vmatpush1.bf16.msra.mxu0 0
      %1765 = vmatprep.subr.bf16.mxu0 0
      %1766 = vmatpush1.bf16.msra.mxu0 0
      %1767 = vmatprep.subr.bf16.mxu0 0
      %1768 = vmatpush1.bf16.msra.mxu0 0
      %1769 = vmatprep.subr.bf16.mxu0 0
      %1770 = vmatpush1.bf16.msra.mxu0 0
      %1771 = vmatprep.mubr.bf16.mxu0 0
      %1772 = vmatmul.mubr.bf16.gmra.mrb[0].mxu0 %v1737
      %v1773 = vpop.f32.mrb[0].mxu0
      %v1774 = vadd.f32 0.0, %v1773
      %v1775 = vpop.f32.mrb[0].mxu0
      %v1776 = vpop.f32.mrb[0].mxu0
      %v1777 = vpop.f32.mrb[0].mxu0
      %1778 = vdwg.mxu0
      %v1781 = vunpack.c.l.b16 %v1431
      %v1782 = vunpack.c.l.b16 %v1432
      %v1783 = vpack.c.b16 %v1782, %v1781
      %v1786 = vsel %vm1319, %v1430, 0
      %1788 = vmatprep.subr.bf16.mxu0 0
      %1789 = vmatpush1.bf16.msra.mxu0 %v1783
      %1790 = vmatprep.subr.bf16.mxu0 0
      %1791 = vmatpush1.bf16.msra.mxu0 0
      %1792 = vmatprep.subr.bf16.mxu0 0
      %1793 = vmatpush1.bf16.msra.mxu0 0
      %1794 = vmatprep.subr.bf16.mxu0 0
      %1795 = vmatpush1.bf16.msra.mxu0 0
      %1796 = vmatprep.subr.bf16.mxu0 0
      %1797 = vmatpush1.bf16.msra.mxu0 0
      %1798 = vmatprep.subr.bf16.mxu0 0
      %1799 = vmatpush1.bf16.msra.mxu0 0
      %1800 = vmatprep.subr.bf16.mxu0 0
      %1801 = vmatpush1.bf16.msra.mxu0 0
      %1802 = vmatprep.subr.bf16.mxu0 0
      %1803 = vmatpush1.bf16.msra.mxu0 0
      %1804 = vmatprep.subr.bf16.mxu0 0
      %1805 = vmatpush1.bf16.msra.mxu0 0
      %1806 = vmatprep.subr.bf16.mxu0 0
      %1807 = vmatpush1.bf16.msra.mxu0 0
      %1808 = vmatprep.subr.bf16.mxu0 0
      %1809 = vmatpush1.bf16.msra.mxu0 0
      %1810 = vmatprep.subr.bf16.mxu0 0
      %1811 = vmatpush1.bf16.msra.mxu0 0
      %1812 = vmatprep.subr.bf16.mxu0 0
      %1813 = vmatpush1.bf16.msra.mxu0 0
      %1814 = vmatprep.subr.bf16.mxu0 0
      %1815 = vmatpush1.bf16.msra.mxu0 0
      %1816 = vmatprep.subr.bf16.mxu0 0
      %1817 = vmatpush1.bf16.msra.mxu0 0
      %1818 = vmatprep.subr.bf16.mxu0 0
      %1819 = vmatpush1.bf16.msra.mxu0 0
      %1820 = vmatprep.mubr.bf16.mxu0 0
      %1821 = vmatmul.mubr.bf16.gmra.mrb[0].mxu0 %v1786
      %v1822 = vpop.f32.mrb[0].mxu0
      %v1823 = vadd.f32 %v1774, %v1822
      %v1824 = vpop.f32.mrb[0].mxu0
      %v1825 = vpop.f32.mrb[0].mxu0
      %v1826 = vpop.f32.mrb[0].mxu0
      %1827 = vdwg.mxu0
      %v1828 = vlaneseq
      %v1829 = vshrl.u32 %v1828, 7
      %v1830 = vsub.s32 0, %v1829
      %v1831 = vrot.slane %v1101, %v1830
      %v1832 = vadd.f32 %v1823, %v1831
      %v1833 = vlaneseq
      %v1834 = vshrl.u32 %v1833, 7
      %v1835 = vsub.s32 0, %v1834
      %v1836 = vrot.slane %v1097, %v1835
      %v1837 = vmul.f32 %v1836, %v1832
      %v1838 = vadd.f32 %v1094, %v1837
      %v1839 = vsel %vm1103, %v1838, 0.0
      %1840 = vadd.xlane.f32.xlu0 %v1839
      %v1841 = vpop.xlane.xlu0 %1840
      %v1842 = vmul.f32 %v1841, %v1107
      %v1843 = vsub.f32 %v1838, %v1842
      %v1844 = vmul.f32 %v1843, %v1843
      %v1845 = vsel %vm1103, %v1844, 0.0
      %1846 = vadd.xlane.f32.xlu0 %v1845
      %v1847 = vpop.xlane.xlu0 %1846
      %v1848 = vmul.f32 %v1847, %v1107
      %v1849 = vadd.f32 %v1848, 1e-06
      %v1850 = vrsqrt.pop %v1849
      %v1851 = vmul.f32 %v1843, %v1850
      %v1852 = vlaneseq
      %v1853 = vshrl.u32 %v1852, 7
      %v1854 = vsub.s32 0, %v1853
      %v1855 = vrot.slane %v1098, %v1854
      %v1856 = vmul.f32 %v1851, %v1855
      %v1857 = vlaneseq
      %v1858 = vshrl.u32 %v1857, 7
      %v1859 = vsub.s32 0, %v1858
      %v1860 = vrot.slane %v1099, %v1859
      %v1861 = vadd.f32 %v1856, %v1860
      %v1862 = vpack.c.bf16 %v1861, %v1861
      %v1863 = vld [vmem:[%s634] sm:$0xf]
      %v1864 = vld [vmem:[%s634 + $0x4] sm:$0xf]
      %v1865 = vld [vmem:[%s634 + $0x8] sm:$0xf]
      %v1866 = vld [vmem:[%s634 + $0xc] sm:$0xf]
      %v1867 = vld [vmem:[%s637] sm:$0x1]
      %v1869 = vlaneseq
      %v1870 = vshrl.u32 %v1869, 7
      %v1871 = vsub.s32 0, %v1870
      %v1872 = vrot.slane %v1867, %v1871
      %v1878 = vunpack.c.l.b16 %v1863
      %v1879 = vunpack.c.l.b16 %v1864
      %v1880 = vunpack.c.l.b16 %v1865
      %v1881 = vunpack.c.l.b16 %v1866
      %v1882 = vpack.c.b16 %v1879, %v1878
      %v1883 = vpack.c.b16 %v1881, %v1880
      %v1887 = vsel %vm1152, %v1862, 0
      %1889 = vmatprep.subr.bf16.mxu0 0
      %1890 = vmatpush1.bf16.msra.mxu0 %v1882
      %1891 = vmatprep.subr.bf16.mxu0 0
      %1892 = vmatpush1.bf16.msra.mxu0 %v1883
      %1893 = vmatprep.subr.bf16.mxu0 0
      %1894 = vmatpush1.bf16.msra.mxu0 0
      %1895 = vmatprep.subr.bf16.mxu0 0
      %1896 = vmatpush1.bf16.msra.mxu0 0
      %1897 = vmatprep.subr.bf16.mxu0 0
      %1898 = vmatpush1.bf16.msra.mxu0 0
      %1899 = vmatprep.subr.bf16.mxu0 0
      %1900 = vmatpush1.bf16.msra.mxu0 0
      %1901 = vmatprep.subr.bf16.mxu0 0
      %1902 = vmatpush1.bf16.msra.mxu0 0
      %1903 = vmatprep.subr.bf16.mxu0 0
      %1904 = vmatpush1.bf16.msra.mxu0 0
      %1905 = vmatprep.subr.bf16.mxu0 0
      %1906 = vmatpush1.bf16.msra.mxu0 0
      %1907 = vmatprep.subr.bf16.mxu0 0
      %1908 = vmatpush1.bf16.msra.mxu0 0
      %1909 = vmatprep.subr.bf16.mxu0 0
      %1910 = vmatpush1.bf16.msra.mxu0 0
      %1911 = vmatprep.subr.bf16.mxu0 0
      %1912 = vmatpush1.bf16.msra.mxu0 0
      %1913 = vmatprep.subr.bf16.mxu0 0
      %1914 = vmatpush1.bf16.msra.mxu0 0
      %1915 = vmatprep.subr.bf16.mxu0 0
      %1916 = vmatpush1.bf16.msra.mxu0 0
      %1917 = vmatprep.subr.bf16.mxu0 0
      %1918 = vmatpush1.bf16.msra.mxu0 0
      %1919 = vmatprep.subr.bf16.mxu0 0
      %1920 = vmatpush1.bf16.msra.mxu0 0
      %1921 = vmatprep.mubr.bf16.mxu0 0
      %1922 = vmatmul.mubr.bf16.gmra.mrb[0].mxu0 %v1887
      %v1923 = vpop.f32.mrb[0].mxu0
      %v1924 = vadd.f32 %v1872, %v1923
      %v1925 = vpop.f32.mrb[0].mxu0
      %v1926 = vpop.f32.mrb[0].mxu0
      %v1927 = vpop.f32.mrb[0].mxu0
      %1928 = vdwg.mxu0
      %v1929 = vmul.f32 %v1924, 0.5
      %v1930 = vmul.f32 %v1924, 0.044715
      %v1931 = vmul.f32 %v1930, %v1924
      %v1932 = vmul.f32 %v1931, %v1924
      %v1933 = vadd.f32 %v1924, %v1932
      %v1934 = vmul.f32 %v1933, 0.7978846
      %v1935 = vtanh.pop %v1934
      %v1936 = vadd.f32 %v1935, 1.0
      %v1937 = vmul.f32 %v1929, %v1936
      %v1938 = vpack.c.bf16 %v1937, %v1937
      %v1939 = vld [vmem:[%s642] sm:$0xf]
      %v1940 = vld [vmem:[%s642 + $0x4] sm:$0xf]
      %v1941 = vld [vmem:[%s642 + $0x8] sm:$0xf]
      %v1942 = vld [vmem:[%s642 + $0xc] sm:$0xf]
      %v1943 = vld [vmem:[%s642 + $0x10] sm:$0xf]
      %v1944 = vld [vmem:[%s642 + $0x14] sm:$0xf]
      %v1945 = vld [vmem:[%s642 + $0x18] sm:$0xf]
      %v1946 = vld [vmem:[%s642 + $0x1c] sm:$0xf]
      %v1947 = vld [vmem:[%s642 + $0x20] sm:$0xf]
      %v1948 = vld [vmem:[%s642 + $0x24] sm:$0xf]
      %v1949 = vld [vmem:[%s642 + $0x28] sm:$0xf]
      %v1950 = vld [vmem:[%s642 + $0x2c] sm:$0xf]
      %v1951 = vld [vmem:[%s642 + $0x30] sm:$0xf]
      %v1952 = vld [vmem:[%s642 + $0x34] sm:$0xf]
      %v1953 = vld [vmem:[%s642 + $0x38] sm:$0xf]
      %v1954 = vld [vmem:[%s642 + $0x3c] sm:$0xf]
      %v1955 = vlaneseq
      %v1956 = vshrl.u32 %v1955, 7
      %v1957 = vsub.s32 0, %v1956
      %v1958 = vrot.slane %v1102, %v1957
      %v1975 = vunpack.c.l.b16 %v1939
      %v1976 = vunpack.c.l.b16 %v1940
      %v1977 = vunpack.c.l.b16 %v1941
      %v1978 = vunpack.c.l.b16 %v1942
      %v1979 = vunpack.c.l.b16 %v1943
      %v1980 = vunpack.c.l.b16 %v1944
      %v1981 = vunpack.c.l.b16 %v1945
      %v1982 = vunpack.c.l.b16 %v1946
      %v1983 = vunpack.c.l.b16 %v1947
      %v1984 = vunpack.c.l.b16 %v1948
      %v1985 = vunpack.c.l.b16 %v1949
      %v1986 = vunpack.c.l.b16 %v1950
      %v1987 = vunpack.c.l.b16 %v1951
      %v1988 = vunpack.c.l.b16 %v1952
      %v1989 = vunpack.c.l.b16 %v1953
      %v1990 = vunpack.c.l.b16 %v1954
      %v1991 = vpack.c.b16 %v1976, %v1975
      %v1992 = vpack.c.b16 %v1978, %v1977
      %v1993 = vpack.c.b16 %v1980, %v1979
      %v1994 = vpack.c.b16 %v1982, %v1981
      %v1995 = vpack.c.b16 %v1984, %v1983
      %v1996 = vpack.c.b16 %v1986, %v1985
      %v1997 = vpack.c.b16 %v1988, %v1987
      %v1998 = vpack.c.b16 %v1990, %v1989
      %2007 = vmatprep.subr.bf16.mxu0 0
      %2008 = vmatpush1.bf16.msra.mxu0 %v1991
      %2009 = vmatprep.subr.bf16.mxu0 0
      %2010 = vmatpush1.bf16.msra.mxu0 %v1992
      %2011 = vmatprep.subr.bf16.mxu0 0
      %2012 = vmatpush1.bf16.msra.mxu0 %v1993
      %2013 = vmatprep.subr.bf16.mxu0 0
      %2014 = vmatpush1.bf16.msra.mxu0 %v1994
      %2015 = vmatprep.subr.bf16.mxu0 0
      %2016 = vmatpush1.bf16.msra.mxu0 %v1995
      %2017 = vmatprep.subr.bf16.mxu0 0
      %2018 = vmatpush1.bf16.msra.mxu0 %v1996
      %2019 = vmatprep.subr.bf16.mxu0 0
      %2020 = vmatpush1.bf16.msra.mxu0 %v1997
      %2021 = vmatprep.subr.bf16.mxu0 0
      %2022 = vmatpush1.bf16.msra.mxu0 %v1998
      %2023 = vmatprep.subr.bf16.mxu0 0
      %2024 = vmatpush1.bf16.msra.mxu0 0
      %2025 = vmatprep.subr.bf16.mxu0 0
      %2026 = vmatpush1.bf16.msra.mxu0 0
      %2027 = vmatprep.subr.bf16.mxu0 0
      %2028 = vmatpush1.bf16.msra.mxu0 0
      %2029 = vmatprep.subr.bf16.mxu0 0
      %2030 = vmatpush1.bf16.msra.mxu0 0
      %2031 = vmatprep.subr.bf16.mxu0 0
      %2032 = vmatpush1.bf16.msra.mxu0 0
      %2033 = vmatprep.subr.bf16.mxu0 0
      %2034 = vmatpush1.bf16.msra.mxu0 0
      %2035 = vmatprep.subr.bf16.mxu0 0
      %2036 = vmatpush1.bf16.msra.mxu0 0
      %2037 = vmatprep.subr.bf16.mxu0 0
      %2038 = vmatpush1.bf16.msra.mxu0 0
      %2039 = vmatprep.mubr.bf16.mxu0 0
      %2040 = vmatmul.mubr.bf16.gmra.mrb[0].mxu0 %v1938
      %v2041 = vpop.f32.mrb[0].mxu0
      %v2042 = vadd.f32 %v1958, %v2041
      %v2043 = vpop.f32.mrb[0].mxu0
      %v2044 = vpop.f32.mrb[0].mxu0
      %v2045 = vpop.f32.mrb[0].mxu0
      %2046 = vdwg.mxu0
      %v2047 = vlaneseq
      %v2048 = vshrl.u32 %v2047, 7
      %v2049 = vsub.s32 0, %v2048
      %v2050 = vrot.slane %v1100, %v2049
      %v2051 = vmul.f32 %v2050, %v2042
      %v2052 = vadd.f32 %v1838, %v2051
      %2053 = vst.msk [vmem:[#allocation2] sm:$0x1f] %vm1103, %v2052
      %p2054 = scmp.eq.s32.totalorder %s32, 1
      // Predicated region
      $region81: #{_lambda_.1} parent=75 // pred_check
        %p2055 = pneg %p2054
      $region82: #{_lambda_.1} parent=75 // pred_check_branch
        %2057 = sbr.rel (%p2055) target = $region84
      $region83: #{_lambda_.1} parent=75 // pred_region
        %v2058 = vld [vmem:[%s12] sm:$0x1]
        %v2059 = vld [vmem:[%s12 + $0x1] sm:$0x1]
        %v2060 = vsel %vm1103, %v2052, 0.0
        %2061 = vadd.xlane.f32.xlu0 %v2060
        %v2062 = vpop.xlane.xlu0 %2061
        %v2063 = vmul.f32 %v2062, %v1107
        %v2064 = vsub.f32 %v2052, %v2063
        %v2065 = vmul.f32 %v2064, %v2064
        %v2066 = vsel %vm1103, %v2065, 0.0
        %2067 = vadd.xlane.f32.xlu0 %v2066
        %v2068 = vpop.xlane.xlu0 %2067
        %v2069 = vmul.f32 %v2068, %v1107
        %v2070 = vadd.f32 %v2069, 1e-06
        %v2071 = vrsqrt.pop %v2070
        %v2072 = vmul.f32 %v2064, %v2071
        %v2073 = vlaneseq
        %v2074 = vshrl.u32 %v2073, 7
        %v2075 = vsub.s32 0, %v2074
        %v2076 = vrot.slane %v2058, %v2075
        %v2077 = vmul.f32 %v2072, %v2076
        %v2078 = vlaneseq
        %v2079 = vshrl.u32 %v2078, 7
        %v2080 = vsub.s32 0, %v2079
        %v2081 = vrot.slane %v2059, %v2080
        %v2082 = vadd.f32 %v2077, %v2081
        %v2083 = vld [vmem:[%s12 + $0x2] sm:$0x1]
        %v2084 = vlaneseq
        %v2085 = vshrl.u32 %v2084, 7
        %v2086 = vsub.s32 0, %v2085
        %v2087 = vrot.slane %v2083, %v2086
        %v2088 = vmul.f32 %v2082, %v2087
        %v2089 = vsel %vm1103, %v2088, 0.0
        %2090 = vadd.xlane.f32.xlu0 %v2089
        %v2091 = vpop.xlane.xlu0 %2090
        %v2092 = vld [vmem:[#allocation3] sm:$0x1]
        %v2094 = vlaneseq
        %v2095 = vshrl.u32 %v2094, 7
        %v2096 = vsub.s32 0, %v2095
        %v2097 = vrot.slane %v2092, %v2096
        %v2099 = vadd.f32 %v2091, %v2097
        %v2100 = vmin.f32 %v2099, 0.0
        %v2101 = vand.u32 2147483647, %v2099
        %v2102 = vsub.f32 0.0, %v2101
        %v2103 = vmul.f32 %v2102, 1.442695
        %v2104 = vpow.pop %v2103
        %v2105 = vadd.f32 %v2104, 1.0
        %v2106 = vlog2.pop %v2105
        %v2107 = vmul.f32 %v2106, 0.6931472
        %v2108 = vmul.f32 -0.5, %v2104
        %v2109 = vadd.f32 %v2108, 1.0
        %v2110 = vmul.f32 %v2109, %v2104
        %v2111 = vand.u32 2147483647, %v2104
        %vm2112 = vcmp.lt.f32.partialorder %v2111, 0.0004427343
        %v2113 = vsel %vm2112, %v2110, %v2107
        %v2114 = vsub.f32 %v2100, %v2113
        %v2115 = vlaneseq
        %v2116 = vshrl.u32 %v2115, 7
        %vm2117 = vcmp.ge.s32.totalorder %v2116, 1
        %v2118 = vsel %vm2117, 1, 0
        %v2119 = vcvt.s32.f32 %v2118
        %v2120 = vmul.f32 %v2114, %v2119
        %vm2121 = vcmask 4096
        %v2122 = vsel %vm2121, %v2120, 0.0
        %v2123 = vrot.slane %v2122, 4
        %v2124 = vadd.f32 %v2122, %v2123
        %v2125 = vrot.slane %v2124, 2
        %v2126 = vadd.f32 %v2124, %v2125
        %v2127 = vrot.slane %v2126, 1
        %v2128 = vadd.f32 %v2126, %v2127
        %v2129 = vmul.f32 %v2128, 1.442695
        %v2130 = vpow.pop %v2129
        %v2131 = vsub.f32 1.0, %v2130
        %vm2132 = vcmask 0
        %2133 = vst.msk [vmem:[%s645] sm:$0x1] %vm2132, %v2131
      $region84: #{_lambda_.1} parent=75 // pred_fallthru
        _
      %p2134 = scmp.lt.s32.totalorder %s31, 1
      %s2135 = scalar_select %p2134, %s31, 1
      %s2136 = scalar_lea.vmem %s14, %s2135
      // Predicated region
      $region85: #{_lambda_.1} parent=75 // pred_check
        %p2137 = pneg %p401
      $region86: #{_lambda_.1} parent=75 // pred_check_branch
        %2139 = sbr.rel (%p2137) target = $region88
      $region87: #{_lambda_.1} parent=75 // pred_region
        _
      $region88: #{_lambda_.1} parent=75 // pred_fallthru
        _
    $region76: #{_lambda_.1} parent=5 // pred_fallthru
      _
    %p2140 = scmp.le.s32.totalorder 2, %s22
    // Predicated region
    $region89: #{_lambda_.1} parent=5 // pred_check
      %p2141 = pneg %p2140
    $region90: #{_lambda_.1} parent=5 // pred_check_branch
      %2143 = sbr.rel (%p2141) target = $region92
    $region91: #{_lambda_.1} parent=5 // pred_region
      %s2144 = ssub.s32 %s22, 2
      // Predicated region
      $region93: #{_lambda_.1} parent=91 // pred_check
        %p2145 = pneg %p407
      $region94: #{_lambda_.1} parent=91 // pred_check_branch
        %2147 = sbr.rel (%p2145) target = $region96
      $region95: #{_lambda_.1} parent=91 // pred_region
        %p2148 = scmp.lt.s32.totalorder %s33, 1
        %s2149 = scalar_select %p2148, %s33, 1
        %s2150 = scalar_lea.vmem %s14, %s2149
      $region96: #{_lambda_.1} parent=91 // pred_fallthru
        _
    $region92: #{_lambda_.1} parent=5 // pred_fallthru
      _
  $region6: #{_lambda_.1} parent=0 // loop_footer
    %s26 = sadd.s32 1, %s22
  $region7: #{_lambda_.1} parent=0 // loop_footer_branch
    %21 = sbr.rel target = $region3
  $region8: #{_lambda_.1} parent=0 // loop_exit
    _

</llo_original>
